<compile_context>
chip_gen: v7x
topology: tpu7x:2x2x1
jax: 0.10.0
libtpu: 0.0.40
codegen_flags: <defaults>
</compile_context>

<pallas_src>
import jax
import jax.numpy as jnp
from jax import lax
from jax.experimental import pallas as pl
from jax.experimental.pallas import tpu as pltpu

# ---- small, self-consistent hyperparameters (stand-ins for `hp`) -------------
MFCC_DIM2 = 8        # hp.mfcc_dim2  (input feature dim / conv_in in_channels)
CDIM = 16            # hp.compute_dim
MFCC_DIM = 16        # hp.mfcc_dim == input sequence length T
NUM_RES = 2          # num_resblocks
BATCH = 2            # batch size of one module forward
GROUPS = 4           # independent forward passes batched into one pallas_call
EPS = 1e-5

T = MFCC_DIM
L1 = (T - 1) // 2 + 1            # length after conv_in  (k=3, pad=1, stride=2)
L2 = (L1 - 1) // 2 + 1           # length after conv_out (k=3, pad=1, stride=2)
POOL_K = MFCC_DIM // 2 // 2      # AvgPool1d kernel size
assert POOL_K == L2, "avg_pool must cover the whole remaining length"
BL = BATCH * L1                  # rows of the fused (batch*length, channel) slab

TAP_PAD = 8                      # sublane-tile aligned row stride per tap in pool mat
POOL_ROWS = 3 * TAP_PAD

# ---- static row offsets inside the packed parameter buffer -------------------
N_CONVS = 2 * NUM_RES
OFF_W_IN = 0                                   # (3*MFCC_DIM2, CDIM)
OFF_W_RES = OFF_W_IN + 3 * MFCC_DIM2           # N_CONVS x (3*CDIM, CDIM)
OFF_W_OUT = OFF_W_RES + N_CONVS * 3 * CDIM     # (3*CDIM, CDIM)
OFF_VEC = OFF_W_OUT + 3 * CDIM                 # b_in, g_in, be_in  (1 row each)
OFF_RES_VEC = OFF_VEC + 3                      # per conv: bias, gamma, beta
OFF_B_OUT = OFF_RES_VEC + 3 * N_CONVS          # conv_out bias
N_ROWS = OFF_B_OUT + 1


# ------------------------------- Pallas kernel --------------------------------
def audio_block_kernel(xe_ref, p_ref, pool_ref, o_ref):
    """One grid step == one independent AudioBlock2 forward (batch = BATCH).

       xe_ref:   (BL, 3*MFCC_DIM2)   im2col of this group's input (stride-2 taps)
       p_ref:    (N_ROWS, CDIM)      packed weights / biases / BN params (resident)
       pool_ref: (POOL_ROWS, BL)     conv_out(stride 2) + avg-pool matrix (resident)
       o_ref:    (BATCH, CDIM)
    """
    # Full-width batch-edge masks, built once (lane-dense, hoisted out of the loop).
    row = lax.broadcasted_iota(jnp.int32, (BL, CDIM), 0)
    pos = row % L1                                        # position inside each batch
    not_first = (pos != 0).astype(jnp.float32)            # 0 on first row of a batch
    not_last = (pos != L1 - 1).astype(jnp.float32)        # 0 on last  row of a batch

    def vec(r):                                           # (1, CDIM) parameter row
        return p_ref[r:r + 1, :]

    def bn(h, g_row, b_row):
        # training-mode BatchNorm1d over (batch, length), folded to scale/shift.
        m = jnp.mean(h, axis=0, keepdims=True)
        c = h - m
        v = jnp.mean(c * c, axis=0, keepdims=True)        # centered (two-pass) variance
        s = vec(g_row) * lax.rsqrt(v + EPS)               # rsqrt -> EUP slot
        t = vec(b_row) - m * s
        return h * s + t                                  # 2 full-slab VPU ops

    def dot(a, w_row0, n_rows):                           # a @ static slice of params
        return jnp.dot(a, p_ref[w_row0:w_row0 + n_rows, :],
                       preferred_element_type=jnp.float32)

    # conv_in (stride 2, taps pre-gathered in the wrapper) -> BN -> ReLU
    h = dot(xe_ref[...], OFF_W_IN, 3 * MFCC_DIM2) + vec(OFF_VEC)
    h = jnp.maximum(bn(h, OFF_VEC + 1, OFF_VEC + 2), 0.0)

    for i in range(NUM_RES):
        res = h
        for j in range(2):
            c = 2 * i + j
            # stride-1 conv (k=3, pad=1): +-1 row shifts via XLU roll; the masks
            # zero the wrapped / cross-batch rows so the shift is exact.
            hl = pltpu.roll(h, 1, 0) * not_first          # h[l-1]
            hr = pltpu.roll(h, BL - 1, 0) * not_last      # h[l+1]  (roll by -1)
            w0 = OFF_W_RES + c * 3 * CDIM
            # tap-split accumulated dots: no lane-axis concat / relayout
            h = (dot(hl, w0, CDIM)
                 + dot(h, w0 + CDIM, CDIM)
                 + dot(hr, w0 + 2 * CDIM, CDIM)
                 + vec(OFF_RES_VEC + 3 * c))
            h = bn(h, OFF_RES_VEC + 3 * c + 1, OFF_RES_VEC + 3 * c + 2)
            if j == 0:
                h = jnp.maximum(h, 0.0)
        h = h + res

    # conv_out (stride 2) + full-length AvgPool1d, folded: one pooling matmul
    # (tap-averaged rows, sublane-tile aligned) + 3 accumulated dots.
    m = jnp.dot(pool_ref[...], h, preferred_element_type=jnp.float32)   # (POOL_ROWS, CDIM)
    o = (dot(m[0:BATCH], OFF_W_OUT, CDIM)
         + dot(m[TAP_PAD:TAP_PAD + BATCH], OFF_W_OUT + CDIM, CDIM)
         + dot(m[2 * TAP_PAD:2 * TAP_PAD + BATCH], OFF_W_OUT + 2 * CDIM, CDIM))
    o_ref[...] = o + vec(OFF_B_OUT)


# --------------------------------- wrapper -------------------------------------
def _im2col_in(x):
    """Stride-2 / k=3 / pad=1 im2col of the raw input.  x: (G, B, T, Cin)."""
    g, b, t, c = x.shape
    xp = jnp.pad(x, ((0, 0), (0, 0), (1, 1), (0, 0)))
    taps = [xp[:, :, k:k + 2 * L1:2, :] for k in range(3)]       # x[2l + k - 1]
    xcol = jnp.concatenate(taps, axis=-1)                        # (G, B, L1, 3*Cin)
    return xcol.reshape(g, b * L1, 3 * c)                        # (G, BL, 3*Cin)


def _pool_matrix():
    """(POOL_ROWS, BL): row TAP_PAD*k + b averages conv_out's tap-k inputs of batch b."""
    rows = [[0.0] * BL for _ in range(POOL_ROWS)]
    inv = 1.0 / L2
    for k in range(3):
        for b in range(BATCH):
            for l in range(L2):
                idx = 2 * l + k - 1
                if 0 <= idx < L1:
                    rows[TAP_PAD * k + b][b * L1 + idx] += inv
    return jnp.array(rows, dtype=jnp.float32)


def pack_params(w_in_t, b_in, g_in, be_in, res_params, w_out_t, b_out):
    """Pack all (torch-layout) parameters into ONE (N_ROWS, CDIM) f32 buffer."""
    def fuse(w):                     # (Cout, Cin, 3) -> (3*Cin, Cout), tap-major rows
        return jnp.concatenate([w[:, :, k].T for k in range(3)], axis=0)

    w_rows = [fuse(w_in_t)]
    vec_rows = [b_in[None, :], g_in[None, :], be_in[None, :]]
    res_vec = []
    for (w1, b1, g1, be1, w2, b2, g2, be2) in res_params:
        w_rows += [fuse(w1), fuse(w2)]
        res_vec += [b1[None, :], g1[None, :], be1[None, :],
                    b2[None, :], g2[None, :], be2[None, :]]
    w_rows.append(fuse(w_out_t))
    params = jnp.concatenate(w_rows + vec_rows + res_vec + [b_out[None, :]], axis=0)
    assert params.shape == (N_ROWS, CDIM), params.shape
    return params


def audio_block(x, params, pool):
    """x: (G, BATCH, T, MFCC_DIM2) -- G independent module forwards of batch BATCH.
       Returns (G, BATCH, 1, CDIM)."""
    g = x.shape[0]
    xe = _im2col_in(x)                                           # layout plumbing only
    out = pl.pallas_call(
        audio_block_kernel,
        out_shape=jax.ShapeDtypeStruct((g, BATCH, CDIM), jnp.float32),
        grid=(g,),
        in_specs=[
            pl.BlockSpec((None, BL, 3 * MFCC_DIM2), lambda i: (i, 0, 0)),
            pl.BlockSpec((N_ROWS, CDIM), lambda i: (0, 0)),      # VMEM-resident params
            pl.BlockSpec((POOL_ROWS, BL), lambda i: (0, 0)),     # VMEM-resident pool mat
        ],
        out_specs=pl.BlockSpec((None, BATCH, CDIM), lambda i: (i, 0, 0)),
        compiler_params=pltpu.CompilerParams(
            dimension_semantics=("parallel",)),                  # v7x: 2 TCs split groups
    )(xe, params, pool)
    return out[:, :, None, :]                                    # (G, B, 1, CDIM)


# --------------------------- pure-JAX reference -------------------------------
def ref_forward(x, torch_params):
    """Reference for ONE module forward.  x: (B, T, MFCC_DIM2) -> (B, 1, CDIM)."""
    (w_in_t, b_in, g_in, be_in, res_params, w_out_t, b_out) = torch_params
    h = jnp.transpose(x, (0, 2, 1))                              # (B, C, L) like torch

    def conv1d(h, w, b, stride):
        y = lax.conv_general_dilated(
            h, w, window_strides=(stride,), padding=((1, 1),),
            dimension_numbers=('NCH', 'OIH', 'NCH'),
            precision=lax.Precision.HIGHEST)
        return y + b[None, :, None]

    def bn(h, gamma, beta):
        m = jnp.mean(h, axis=(0, 2), keepdims=True)
        v = jnp.mean((h - m) ** 2, axis=(0, 2), keepdims=True)
        return (h - m) / jnp.sqrt(v + EPS) * gamma[None, :, None] + beta[None, :, None]

    h = jax.nn.relu(bn(conv1d(h, w_in_t, b_in, 2), g_in, be_in))
    for (w1, b1, g1, be1, w2, b2, g2, be2) in res_params:
        r = h
        h = jax.nn.relu(bn(conv1d(h, w1, b1, 1), g1, be1))
        h = bn(conv1d(h, w2, b2, 1), g2, be2)
        h = h + r
    h = conv1d(h, w_out_t, b_out, 2)
    h = jnp.mean(h, axis=2, keepdims=True)                       # AvgPool1d(POOL_K)
    return jnp.transpose(h, (0, 2, 1))                           # (B, 1, CDIM)


# ----------------------------------- main --------------------------------------
if __name__ == "__main__":
    keys = iter(jax.random.split(jax.random.PRNGKey(0), 64))

    def nrm(shape, scale):
        return scale * jax.random.normal(next(keys), shape, dtype=jnp.float32)

    # deterministic synthetic parameters (torch layouts: conv weight (Cout, Cin, K))
    w_in_t = nrm((CDIM, MFCC_DIM2, 3), 0.3)
    b_in = nrm((CDIM,), 0.1)
    g_in = 1.0 + nrm((CDIM,), 0.1)
    be_in = nrm((CDIM,), 0.1)

    res_params = []
    for _ in range(NUM_RES):
        blk = []
        for _ in range(2):
            blk.extend([nrm((CDIM, CDIM, 3), 0.2), nrm((CDIM,), 0.1),
                        1.0 + nrm((CDIM,), 0.1), nrm((CDIM,), 0.1)])
        res_params.append(tuple(blk))

    w_out_t = nrm((CDIM, CDIM, 3), 0.2)
    b_out = nrm((CDIM,), 0.1)

    torch_params = (w_in_t, b_in, g_in, be_in, res_params, w_out_t, b_out)

    # GROUPS independent forward passes, each with its own batch of BATCH examples.
    x = nrm((GROUPS, BATCH, T, MFCC_DIM2), 1.0)

    params = pack_params(*torch_params)
    pool = _pool_matrix()

    out = jax.block_until_ready(audio_block(x, params, pool))
    ref = jax.vmap(lambda xg: ref_forward(xg, torch_params))(x)

    assert out.shape == (GROUPS, BATCH, 1, CDIM), out.shape
    assert bool(jnp.all(jnp.isfinite(out)))
    assert jnp.allclose(out, ref, atol=5e-3, rtol=5e-3), (out, ref)
    print("KERNEL_OK")
</pallas_src>

<mosaic_0001>
module attributes {stable_mosaic.version = 11 : i64} {
  func.func @audio_block_kernel(%arg0: i32, %arg1: memref<1x16x24xf32, #tpu.memory_space<vmem>>, %arg2: memref<280x16xf32, #tpu.memory_space<vmem>>, %arg3: memref<24x16xf32, #tpu.memory_space<vmem>>, %arg4: memref<1x2x16xf32, #tpu.memory_space<vmem>>) attributes {dimension_semantics = [#tpu.dimension_semantics<parallel>], iteration_bounds = array<i64: 4>, scalar_prefetch = 0 : i64, scratch_operands = 0 : i64, tpu.core_type = #tpu.core_type<tc>, window_params = [{transform_indices = @transform_0, window_bounds = array<i64: 1, 16, 24>}, {pipeline_mode = #tpu.pipeline_mode<synchronous>, transform_indices = @transform_1, window_bounds = array<i64: 280, 16>}, {pipeline_mode = #tpu.pipeline_mode<synchronous>, transform_indices = @transform_2, window_bounds = array<i64: 24, 16>}, {transform_indices = @transform_3, window_bounds = array<i64: 1, 2, 16>}]} {
    %0 = tpu.iota {dimensions = array<i32: 0>} : vector<16x16xi32>
    %c8_i32 = arith.constant 8 : i32
    %c0_i32 = arith.constant 0 : i32
    %1 = arith.cmpi eq, %c8_i32, %c0_i32 : i32
    %c1_i32 = arith.constant 1 : i32
    %2 = arith.select %1, %c1_i32, %c8_i32 : i32
    %3 = vector.broadcast %2 : i32 to vector<16x16xi32>
    %4 = arith.remsi %0, %3 : vector<16x16xi32>
    %c0_i32_0 = arith.constant 0 : i32
    %5 = vector.broadcast %c0_i32_0 : i32 to vector<16x16xi32>
    %6 = arith.cmpi ne, %4, %5 : vector<16x16xi32>
    %c0_i32_1 = arith.constant 0 : i32
    %7 = vector.broadcast %c0_i32_1 : i32 to vector<16x16xi32>
    %8 = arith.cmpi slt, %4, %7 : vector<16x16xi32>
    %c0_i32_2 = arith.constant 0 : i32
    %9 = arith.cmpi slt, %2, %c0_i32_2 : i32
    %10 = vector.broadcast %9 : i1 to vector<16x16xi1>
    %11 = vector.broadcast %10 : vector<16x16xi1> to vector<16x16xi1>
    %12 = arith.xori %8, %11 : vector<16x16xi1>
    %13 = arith.andi %12, %6 : vector<16x16xi1>
    %14 = vector.broadcast %2 : i32 to vector<16x16xi32>
    %15 = arith.addi %4, %14 : vector<16x16xi32>
    %16 = arith.select %13, %15, %4 : vector<16x16xi1>, vector<16x16xi32>
    %c0_i32_3 = arith.constant 0 : i32
    %17 = vector.broadcast %c0_i32_3 : i32 to vector<16x16xi32>
    %18 = arith.cmpi ne, %16, %17 : vector<16x16xi32>
    %19 = arith.extui %18 : vector<16x16xi1> to vector<16x16xi32>
    %20 = arith.sitofp %19 : vector<16x16xi32> to vector<16x16xf32>
    %c7_i32 = arith.constant 7 : i32
    %21 = vector.broadcast %c7_i32 : i32 to vector<16x16xi32>
    %22 = arith.cmpi ne, %16, %21 : vector<16x16xi32>
    %23 = arith.extui %22 : vector<16x16xi1> to vector<16x16xi32>
    %24 = arith.sitofp %23 : vector<16x16xi32> to vector<16x16xf32>
    %c0 = arith.constant 0 : index
    %c0_4 = arith.constant 0 : index
    %c0_5 = arith.constant 0 : index
    %25 = vector.load %arg1[%c0, %c0_4, %c0_5] : memref<1x16x24xf32, #tpu.memory_space<vmem>>, vector<1x16x24xf32>
    %26 = vector.shape_cast %25 : vector<1x16x24xf32> to vector<16x24xf32>
    %c0_6 = arith.constant 0 : index
    %c0_7 = arith.constant 0 : index
    %27 = vector.load %arg2[%c0_6, %c0_7] : memref<280x16xf32, #tpu.memory_space<vmem>>, vector<24x16xf32>
    %cst = arith.constant dense<0.000000e+00> : vector<16x16xf32>
    %28 = tpu.matmul %26, %27, %cst {dimension_numbers = #tpu.dot_dimension_numbers<[1], [0], [0], [1], [0, 0, 1, 1], [], []>} : vector<16x24xf32>, vector<24x16xf32>, vector<16x16xf32> -> vector<16x16xf32>
    %c264 = arith.constant 264 : index
    %c0_8 = arith.constant 0 : index
    %29 = vector.load %arg2[%c264, %c0_8] : memref<280x16xf32, #tpu.memory_space<vmem>>, vector<1x16xf32>
    %30 = vector.broadcast %29 : vector<1x16xf32> to vector<16x16xf32>
    %31 = arith.addf %28, %30 : vector<16x16xf32>
    %cst_9 = arith.constant dense<0.000000e+00> : vector<16xf32>
    %32 = vector.multi_reduction <add>, %31, %cst_9 [0] : vector<16x16xf32> to vector<16xf32>
    %33 = vector.shape_cast %32 : vector<16xf32> to vector<1x16xf32>
    %cst_10 = arith.constant 1.600000e+01 : f32
    %34 = vector.broadcast %cst_10 : f32 to vector<1x16xf32>
    %35 = arith.divf %33, %34 : vector<1x16xf32>
    %36 = vector.broadcast %35 : vector<1x16xf32> to vector<16x16xf32>
    %37 = arith.subf %31, %36 : vector<16x16xf32>
    %38 = arith.mulf %37, %37 : vector<16x16xf32>
    %cst_11 = arith.constant dense<0.000000e+00> : vector<16xf32>
    %39 = vector.multi_reduction <add>, %38, %cst_11 [0] : vector<16x16xf32> to vector<16xf32>
    %40 = vector.shape_cast %39 : vector<16xf32> to vector<1x16xf32>
    %cst_12 = arith.constant 1.600000e+01 : f32
    %41 = vector.broadcast %cst_12 : f32 to vector<1x16xf32>
    %42 = arith.divf %40, %41 : vector<1x16xf32>
    %c265 = arith.constant 265 : index
    %c0_13 = arith.constant 0 : index
    %43 = vector.load %arg2[%c265, %c0_13] : memref<280x16xf32, #tpu.memory_space<vmem>>, vector<1x16xf32>
    %cst_14 = arith.constant 9.99999974E-6 : f32
    %44 = vector.broadcast %cst_14 : f32 to vector<1x16xf32>
    %45 = arith.addf %42, %44 : vector<1x16xf32>
    %46 = math.rsqrt %45 : vector<1x16xf32>
    %47 = arith.mulf %43, %46 : vector<1x16xf32>
    %c266 = arith.constant 266 : index
    %c0_15 = arith.constant 0 : index
    %48 = vector.load %arg2[%c266, %c0_15] : memref<280x16xf32, #tpu.memory_space<vmem>>, vector<1x16xf32>
    %49 = arith.mulf %35, %47 : vector<1x16xf32>
    %50 = arith.subf %48, %49 : vector<1x16xf32>
    %51 = vector.broadcast %47 : vector<1x16xf32> to vector<16x16xf32>
    %52 = arith.mulf %31, %51 : vector<16x16xf32>
    %53 = vector.broadcast %50 : vector<1x16xf32> to vector<16x16xf32>
    %54 = arith.addf %52, %53 : vector<16x16xf32>
    %cst_16 = arith.constant 0.000000e+00 : f32
    %55 = vector.broadcast %cst_16 : f32 to vector<16x16xf32>
    %56 = arith.maximumf %54, %55 : vector<16x16xf32>
    %c1_i32_17 = arith.constant 1 : i32
    %57 = tpu.dynamic_rotate %56 by %c1_i32_17 dim 0 : vector<16x16xf32>, i32 -> vector<16x16xf32>
    %58 = arith.mulf %57, %20 : vector<16x16xf32>
    %c15_i32 = arith.constant 15 : i32
    %59 = tpu.dynamic_rotate %56 by %c15_i32 dim 0 : vector<16x16xf32>, i32 -> vector<16x16xf32>
    %60 = arith.mulf %59, %24 : vector<16x16xf32>
    %c24 = arith.constant 24 : index
    %c0_18 = arith.constant 0 : index
    %61 = vector.load %arg2[%c24, %c0_18] : memref<280x16xf32, #tpu.memory_space<vmem>>, vector<16x16xf32>
    %cst_19 = arith.constant dense<0.000000e+00> : vector<16x16xf32>
    %62 = tpu.matmul %58, %61, %cst_19 {dimension_numbers = #tpu.dot_dimension_numbers<[1], [0], [0], [1], [0, 0, 1, 1], [], []>} : vector<16x16xf32>, vector<16x16xf32>, vector<16x16xf32> -> vector<16x16xf32>
    %c40 = arith.constant 40 : index
    %c0_20 = arith.constant 0 : index
    %63 = vector.load %arg2[%c40, %c0_20] : memref<280x16xf32, #tpu.memory_space<vmem>>, vector<16x16xf32>
    %cst_21 = arith.constant dense<0.000000e+00> : vector<16x16xf32>
    %64 = tpu.matmul %56, %63, %cst_21 {dimension_numbers = #tpu.dot_dimension_numbers<[1], [0], [0], [1], [0, 0, 1, 1], [], []>} : vector<16x16xf32>, vector<16x16xf32>, vector<16x16xf32> -> vector<16x16xf32>
    %65 = arith.addf %62, %64 : vector<16x16xf32>
    %c56 = arith.constant 56 : index
    %c0_22 = arith.constant 0 : index
    %66 = vector.load %arg2[%c56, %c0_22] : memref<280x16xf32, #tpu.memory_space<vmem>>, vector<16x16xf32>
    %cst_23 = arith.constant dense<0.000000e+00> : vector<16x16xf32>
    %67 = tpu.matmul %60, %66, %cst_23 {dimension_numbers = #tpu.dot_dimension_numbers<[1], [0], [0], [1], [0, 0, 1, 1], [], []>} : vector<16x16xf32>, vector<16x16xf32>, vector<16x16xf32> -> vector<16x16xf32>
    %68 = arith.addf %65, %67 : vector<16x16xf32>
    %c267 = arith.constant 267 : index
    %c0_24 = arith.constant 0 : index
    %69 = vector.load %arg2[%c267, %c0_24] : memref<280x16xf32, #tpu.memory_space<vmem>>, vector<1x16xf32>
    %70 = vector.broadcast %69 : vector<1x16xf32> to vector<16x16xf32>
    %71 = arith.addf %68, %70 : vector<16x16xf32>
    %cst_25 = arith.constant dense<0.000000e+00> : vector<16xf32>
    %72 = vector.multi_reduction <add>, %71, %cst_25 [0] : vector<16x16xf32> to vector<16xf32>
    %73 = vector.shape_cast %72 : vector<16xf32> to vector<1x16xf32>
    %cst_26 = arith.constant 1.600000e+01 : f32
    %74 = vector.broadcast %cst_26 : f32 to vector<1x16xf32>
    %75 = arith.divf %73, %74 : vector<1x16xf32>
    %76 = vector.broadcast %75 : vector<1x16xf32> to vector<16x16xf32>
    %77 = arith.subf %71, %76 : vector<16x16xf32>
    %78 = arith.mulf %77, %77 : vector<16x16xf32>
    %cst_27 = arith.constant dense<0.000000e+00> : vector<16xf32>
    %79 = vector.multi_reduction <add>, %78, %cst_27 [0] : vector<16x16xf32> to vector<16xf32>
    %80 = vector.shape_cast %79 : vector<16xf32> to vector<1x16xf32>
    %cst_28 = arith.constant 1.600000e+01 : f32
    %81 = vector.broadcast %cst_28 : f32 to vector<1x16xf32>
    %82 = arith.divf %80, %81 : vector<1x16xf32>
    %c268 = arith.constant 268 : index
    %c0_29 = arith.constant 0 : index
    %83 = vector.load %arg2[%c268, %c0_29] : memref<280x16xf32, #tpu.memory_space<vmem>>, vector<1x16xf32>
    %cst_30 = arith.constant 9.99999974E-6 : f32
    %84 = vector.broadcast %cst_30 : f32 to vector<1x16xf32>
    %85 = arith.addf %82, %84 : vector<1x16xf32>
    %86 = math.rsqrt %85 : vector<1x16xf32>
    %87 = arith.mulf %83, %86 : vector<1x16xf32>
    %c269 = arith.constant 269 : index
    %c0_31 = arith.constant 0 : index
    %88 = vector.load %arg2[%c269, %c0_31] : memref<280x16xf32, #tpu.memory_space<vmem>>, vector<1x16xf32>
    %89 = arith.mulf %75, %87 : vector<1x16xf32>
    %90 = arith.subf %88, %89 : vector<1x16xf32>
    %91 = vector.broadcast %87 : vector<1x16xf32> to vector<16x16xf32>
    %92 = arith.mulf %71, %91 : vector<16x16xf32>
    %93 = vector.broadcast %90 : vector<1x16xf32> to vector<16x16xf32>
    %94 = arith.addf %92, %93 : vector<16x16xf32>
    %cst_32 = arith.constant 0.000000e+00 : f32
    %95 = vector.broadcast %cst_32 : f32 to vector<16x16xf32>
    %96 = arith.maximumf %94, %95 : vector<16x16xf32>
    %c1_i32_33 = arith.constant 1 : i32
    %97 = tpu.dynamic_rotate %96 by %c1_i32_33 dim 0 : vector<16x16xf32>, i32 -> vector<16x16xf32>
    %98 = arith.mulf %97, %20 : vector<16x16xf32>
    %c15_i32_34 = arith.constant 15 : i32
    %99 = tpu.dynamic_rotate %96 by %c15_i32_34 dim 0 : vector<16x16xf32>, i32 -> vector<16x16xf32>
    %100 = arith.mulf %99, %24 : vector<16x16xf32>
    %c72 = arith.constant 72 : index
    %c0_35 = arith.constant 0 : index
    %101 = vector.load %arg2[%c72, %c0_35] : memref<280x16xf32, #tpu.memory_space<vmem>>, vector<16x16xf32>
    %cst_36 = arith.constant dense<0.000000e+00> : vector<16x16xf32>
    %102 = tpu.matmul %98, %101, %cst_36 {dimension_numbers = #tpu.dot_dimension_numbers<[1], [0], [0], [1], [0, 0, 1, 1], [], []>} : vector<16x16xf32>, vector<16x16xf32>, vector<16x16xf32> -> vector<16x16xf32>
    %c88 = arith.constant 88 : index
    %c0_37 = arith.constant 0 : index
    %103 = vector.load %arg2[%c88, %c0_37] : memref<280x16xf32, #tpu.memory_space<vmem>>, vector<16x16xf32>
    %cst_38 = arith.constant dense<0.000000e+00> : vector<16x16xf32>
    %104 = tpu.matmul %96, %103, %cst_38 {dimension_numbers = #tpu.dot_dimension_numbers<[1], [0], [0], [1], [0, 0, 1, 1], [], []>} : vector<16x16xf32>, vector<16x16xf32>, vector<16x16xf32> -> vector<16x16xf32>
    %105 = arith.addf %102, %104 : vector<16x16xf32>
    %c104 = arith.constant 104 : index
    %c0_39 = arith.constant 0 : index
    %106 = vector.load %arg2[%c104, %c0_39] : memref<280x16xf32, #tpu.memory_space<vmem>>, vector<16x16xf32>
    %cst_40 = arith.constant dense<0.000000e+00> : vector<16x16xf32>
    %107 = tpu.matmul %100, %106, %cst_40 {dimension_numbers = #tpu.dot_dimension_numbers<[1], [0], [0], [1], [0, 0, 1, 1], [], []>} : vector<16x16xf32>, vector<16x16xf32>, vector<16x16xf32> -> vector<16x16xf32>
    %108 = arith.addf %105, %107 : vector<16x16xf32>
    %c270 = arith.constant 270 : index
    %c0_41 = arith.constant 0 : index
    %109 = vector.load %arg2[%c270, %c0_41] : memref<280x16xf32, #tpu.memory_space<vmem>>, vector<1x16xf32>
    %110 = vector.broadcast %109 : vector<1x16xf32> to vector<16x16xf32>
    %111 = arith.addf %108, %110 : vector<16x16xf32>
    %cst_42 = arith.constant dense<0.000000e+00> : vector<16xf32>
    %112 = vector.multi_reduction <add>, %111, %cst_42 [0] : vector<16x16xf32> to vector<16xf32>
    %113 = vector.shape_cast %112 : vector<16xf32> to vector<1x16xf32>
    %cst_43 = arith.constant 1.600000e+01 : f32
    %114 = vector.broadcast %cst_43 : f32 to vector<1x16xf32>
    %115 = arith.divf %113, %114 : vector<1x16xf32>
    %116 = vector.broadcast %115 : vector<1x16xf32> to vector<16x16xf32>
    %117 = arith.subf %111, %116 : vector<16x16xf32>
    %118 = arith.mulf %117, %117 : vector<16x16xf32>
    %cst_44 = arith.constant dense<0.000000e+00> : vector<16xf32>
    %119 = vector.multi_reduction <add>, %118, %cst_44 [0] : vector<16x16xf32> to vector<16xf32>
    %120 = vector.shape_cast %119 : vector<16xf32> to vector<1x16xf32>
    %cst_45 = arith.constant 1.600000e+01 : f32
    %121 = vector.broadcast %cst_45 : f32 to vector<1x16xf32>
    %122 = arith.divf %120, %121 : vector<1x16xf32>
    %c271 = arith.constant 271 : index
    %c0_46 = arith.constant 0 : index
    %123 = vector.load %arg2[%c271, %c0_46] : memref<280x16xf32, #tpu.memory_space<vmem>>, vector<1x16xf32>
    %cst_47 = arith.constant 9.99999974E-6 : f32
    %124 = vector.broadcast %cst_47 : f32 to vector<1x16xf32>
    %125 = arith.addf %122, %124 : vector<1x16xf32>
    %126 = math.rsqrt %125 : vector<1x16xf32>
    %127 = arith.mulf %123, %126 : vector<1x16xf32>
    %c272 = arith.constant 272 : index
    %c0_48 = arith.constant 0 : index
    %128 = vector.load %arg2[%c272, %c0_48] : memref<280x16xf32, #tpu.memory_space<vmem>>, vector<1x16xf32>
    %129 = arith.mulf %115, %127 : vector<1x16xf32>
    %130 = arith.subf %128, %129 : vector<1x16xf32>
    %131 = vector.broadcast %127 : vector<1x16xf32> to vector<16x16xf32>
    %132 = arith.mulf %111, %131 : vector<16x16xf32>
    %133 = vector.broadcast %130 : vector<1x16xf32> to vector<16x16xf32>
    %134 = arith.addf %132, %133 : vector<16x16xf32>
    %135 = arith.addf %134, %56 : vector<16x16xf32>
    %c1_i32_49 = arith.constant 1 : i32
    %136 = tpu.dynamic_rotate %135 by %c1_i32_49 dim 0 : vector<16x16xf32>, i32 -> vector<16x16xf32>
    %137 = arith.mulf %136, %20 : vector<16x16xf32>
    %c15_i32_50 = arith.constant 15 : i32
    %138 = tpu.dynamic_rotate %135 by %c15_i32_50 dim 0 : vector<16x16xf32>, i32 -> vector<16x16xf32>
    %139 = arith.mulf %138, %24 : vector<16x16xf32>
    %c120 = arith.constant 120 : index
    %c0_51 = arith.constant 0 : index
    %140 = vector.load %arg2[%c120, %c0_51] : memref<280x16xf32, #tpu.memory_space<vmem>>, vector<16x16xf32>
    %cst_52 = arith.constant dense<0.000000e+00> : vector<16x16xf32>
    %141 = tpu.matmul %137, %140, %cst_52 {dimension_numbers = #tpu.dot_dimension_numbers<[1], [0], [0], [1], [0, 0, 1, 1], [], []>} : vector<16x16xf32>, vector<16x16xf32>, vector<16x16xf32> -> vector<16x16xf32>
    %c136 = arith.constant 136 : index
    %c0_53 = arith.constant 0 : index
    %142 = vector.load %arg2[%c136, %c0_53] : memref<280x16xf32, #tpu.memory_space<vmem>>, vector<16x16xf32>
    %cst_54 = arith.constant dense<0.000000e+00> : vector<16x16xf32>
    %143 = tpu.matmul %135, %142, %cst_54 {dimension_numbers = #tpu.dot_dimension_numbers<[1], [0], [0], [1], [0, 0, 1, 1], [], []>} : vector<16x16xf32>, vector<16x16xf32>, vector<16x16xf32> -> vector<16x16xf32>
    %144 = arith.addf %141, %143 : vector<16x16xf32>
    %c152 = arith.constant 152 : index
    %c0_55 = arith.constant 0 : index
    %145 = vector.load %arg2[%c152, %c0_55] : memref<280x16xf32, #tpu.memory_space<vmem>>, vector<16x16xf32>
    %cst_56 = arith.constant dense<0.000000e+00> : vector<16x16xf32>
    %146 = tpu.matmul %139, %145, %cst_56 {dimension_numbers = #tpu.dot_dimension_numbers<[1], [0], [0], [1], [0, 0, 1, 1], [], []>} : vector<16x16xf32>, vector<16x16xf32>, vector<16x16xf32> -> vector<16x16xf32>
    %147 = arith.addf %144, %146 : vector<16x16xf32>
    %c273 = arith.constant 273 : index
    %c0_57 = arith.constant 0 : index
    %148 = vector.load %arg2[%c273, %c0_57] : memref<280x16xf32, #tpu.memory_space<vmem>>, vector<1x16xf32>
    %149 = vector.broadcast %148 : vector<1x16xf32> to vector<16x16xf32>
    %150 = arith.addf %147, %149 : vector<16x16xf32>
    %cst_58 = arith.constant dense<0.000000e+00> : vector<16xf32>
    %151 = vector.multi_reduction <add>, %150, %cst_58 [0] : vector<16x16xf32> to vector<16xf32>
    %152 = vector.shape_cast %151 : vector<16xf32> to vector<1x16xf32>
    %cst_59 = arith.constant 1.600000e+01 : f32
    %153 = vector.broadcast %cst_59 : f32 to vector<1x16xf32>
    %154 = arith.divf %152, %153 : vector<1x16xf32>
    %155 = vector.broadcast %154 : vector<1x16xf32> to vector<16x16xf32>
    %156 = arith.subf %150, %155 : vector<16x16xf32>
    %157 = arith.mulf %156, %156 : vector<16x16xf32>
    %cst_60 = arith.constant dense<0.000000e+00> : vector<16xf32>
    %158 = vector.multi_reduction <add>, %157, %cst_60 [0] : vector<16x16xf32> to vector<16xf32>
    %159 = vector.shape_cast %158 : vector<16xf32> to vector<1x16xf32>
    %cst_61 = arith.constant 1.600000e+01 : f32
    %160 = vector.broadcast %cst_61 : f32 to vector<1x16xf32>
    %161 = arith.divf %159, %160 : vector<1x16xf32>
    %c274 = arith.constant 274 : index
    %c0_62 = arith.constant 0 : index
    %162 = vector.load %arg2[%c274, %c0_62] : memref<280x16xf32, #tpu.memory_space<vmem>>, vector<1x16xf32>
    %cst_63 = arith.constant 9.99999974E-6 : f32
    %163 = vector.broadcast %cst_63 : f32 to vector<1x16xf32>
    %164 = arith.addf %161, %163 : vector<1x16xf32>
    %165 = math.rsqrt %164 : vector<1x16xf32>
    %166 = arith.mulf %162, %165 : vector<1x16xf32>
    %c275 = arith.constant 275 : index
    %c0_64 = arith.constant 0 : index
    %167 = vector.load %arg2[%c275, %c0_64] : memref<280x16xf32, #tpu.memory_space<vmem>>, vector<1x16xf32>
    %168 = arith.mulf %154, %166 : vector<1x16xf32>
    %169 = arith.subf %167, %168 : vector<1x16xf32>
    %170 = vector.broadcast %166 : vector<1x16xf32> to vector<16x16xf32>
    %171 = arith.mulf %150, %170 : vector<16x16xf32>
    %172 = vector.broadcast %169 : vector<1x16xf32> to vector<16x16xf32>
    %173 = arith.addf %171, %172 : vector<16x16xf32>
    %cst_65 = arith.constant 0.000000e+00 : f32
    %174 = vector.broadcast %cst_65 : f32 to vector<16x16xf32>
    %175 = arith.maximumf %173, %174 : vector<16x16xf32>
    %c1_i32_66 = arith.constant 1 : i32
    %176 = tpu.dynamic_rotate %175 by %c1_i32_66 dim 0 : vector<16x16xf32>, i32 -> vector<16x16xf32>
    %177 = arith.mulf %176, %20 : vector<16x16xf32>
    %c15_i32_67 = arith.constant 15 : i32
    %178 = tpu.dynamic_rotate %175 by %c15_i32_67 dim 0 : vector<16x16xf32>, i32 -> vector<16x16xf32>
    %179 = arith.mulf %178, %24 : vector<16x16xf32>
    %c168 = arith.constant 168 : index
    %c0_68 = arith.constant 0 : index
    %180 = vector.load %arg2[%c168, %c0_68] : memref<280x16xf32, #tpu.memory_space<vmem>>, vector<16x16xf32>
    %cst_69 = arith.constant dense<0.000000e+00> : vector<16x16xf32>
    %181 = tpu.matmul %177, %180, %cst_69 {dimension_numbers = #tpu.dot_dimension_numbers<[1], [0], [0], [1], [0, 0, 1, 1], [], []>} : vector<16x16xf32>, vector<16x16xf32>, vector<16x16xf32> -> vector<16x16xf32>
    %c184 = arith.constant 184 : index
    %c0_70 = arith.constant 0 : index
    %182 = vector.load %arg2[%c184, %c0_70] : memref<280x16xf32, #tpu.memory_space<vmem>>, vector<16x16xf32>
    %cst_71 = arith.constant dense<0.000000e+00> : vector<16x16xf32>
    %183 = tpu.matmul %175, %182, %cst_71 {dimension_numbers = #tpu.dot_dimension_numbers<[1], [0], [0], [1], [0, 0, 1, 1], [], []>} : vector<16x16xf32>, vector<16x16xf32>, vector<16x16xf32> -> vector<16x16xf32>
    %184 = arith.addf %181, %183 : vector<16x16xf32>
    %c200 = arith.constant 200 : index
    %c0_72 = arith.constant 0 : index
    %185 = vector.load %arg2[%c200, %c0_72] : memref<280x16xf32, #tpu.memory_space<vmem>>, vector<16x16xf32>
    %cst_73 = arith.constant dense<0.000000e+00> : vector<16x16xf32>
    %186 = tpu.matmul %179, %185, %cst_73 {dimension_numbers = #tpu.dot_dimension_numbers<[1], [0], [0], [1], [0, 0, 1, 1], [], []>} : vector<16x16xf32>, vector<16x16xf32>, vector<16x16xf32> -> vector<16x16xf32>
    %187 = arith.addf %184, %186 : vector<16x16xf32>
    %c276 = arith.constant 276 : index
    %c0_74 = arith.constant 0 : index
    %188 = vector.load %arg2[%c276, %c0_74] : memref<280x16xf32, #tpu.memory_space<vmem>>, vector<1x16xf32>
    %189 = vector.broadcast %188 : vector<1x16xf32> to vector<16x16xf32>
    %190 = arith.addf %187, %189 : vector<16x16xf32>
    %cst_75 = arith.constant dense<0.000000e+00> : vector<16xf32>
    %191 = vector.multi_reduction <add>, %190, %cst_75 [0] : vector<16x16xf32> to vector<16xf32>
    %192 = vector.shape_cast %191 : vector<16xf32> to vector<1x16xf32>
    %cst_76 = arith.constant 1.600000e+01 : f32
    %193 = vector.broadcast %cst_76 : f32 to vector<1x16xf32>
    %194 = arith.divf %192, %193 : vector<1x16xf32>
    %195 = vector.broadcast %194 : vector<1x16xf32> to vector<16x16xf32>
    %196 = arith.subf %190, %195 : vector<16x16xf32>
    %197 = arith.mulf %196, %196 : vector<16x16xf32>
    %cst_77 = arith.constant dense<0.000000e+00> : vector<16xf32>
    %198 = vector.multi_reduction <add>, %197, %cst_77 [0] : vector<16x16xf32> to vector<16xf32>
    %199 = vector.shape_cast %198 : vector<16xf32> to vector<1x16xf32>
    %cst_78 = arith.constant 1.600000e+01 : f32
    %200 = vector.broadcast %cst_78 : f32 to vector<1x16xf32>
    %201 = arith.divf %199, %200 : vector<1x16xf32>
    %c277 = arith.constant 277 : index
    %c0_79 = arith.constant 0 : index
    %202 = vector.load %arg2[%c277, %c0_79] : memref<280x16xf32, #tpu.memory_space<vmem>>, vector<1x16xf32>
    %cst_80 = arith.constant 9.99999974E-6 : f32
    %203 = vector.broadcast %cst_80 : f32 to vector<1x16xf32>
    %204 = arith.addf %201, %203 : vector<1x16xf32>
    %205 = math.rsqrt %204 : vector<1x16xf32>
    %206 = arith.mulf %202, %205 : vector<1x16xf32>
    %c278 = arith.constant 278 : index
    %c0_81 = arith.constant 0 : index
    %207 = vector.load %arg2[%c278, %c0_81] : memref<280x16xf32, #tpu.memory_space<vmem>>, vector<1x16xf32>
    %208 = arith.mulf %194, %206 : vector<1x16xf32>
    %209 = arith.subf %207, %208 : vector<1x16xf32>
    %210 = vector.broadcast %206 : vector<1x16xf32> to vector<16x16xf32>
    %211 = arith.mulf %190, %210 : vector<16x16xf32>
    %212 = vector.broadcast %209 : vector<1x16xf32> to vector<16x16xf32>
    %213 = arith.addf %211, %212 : vector<16x16xf32>
    %214 = arith.addf %213, %135 : vector<16x16xf32>
    %c0_82 = arith.constant 0 : index
    %c0_83 = arith.constant 0 : index
    %215 = vector.load %arg3[%c0_82, %c0_83] : memref<24x16xf32, #tpu.memory_space<vmem>>, vector<24x16xf32>
    %cst_84 = arith.constant dense<0.000000e+00> : vector<24x16xf32>
    %216 = tpu.matmul %215, %214, %cst_84 {dimension_numbers = #tpu.dot_dimension_numbers<[1], [0], [0], [1], [0, 0, 1, 1], [], []>} : vector<24x16xf32>, vector<16x16xf32>, vector<24x16xf32> -> vector<24x16xf32>
    %217 = vector.extract_strided_slice %216 {offsets = [0, 0], sizes = [2, 16], strides = [1, 1]} : vector<24x16xf32> to vector<2x16xf32>
    %c216 = arith.constant 216 : index
    %c0_85 = arith.constant 0 : index
    %218 = vector.load %arg2[%c216, %c0_85] : memref<280x16xf32, #tpu.memory_space<vmem>>, vector<16x16xf32>
    %cst_86 = arith.constant dense<0.000000e+00> : vector<2x16xf32>
    %219 = tpu.matmul %217, %218, %cst_86 {dimension_numbers = #tpu.dot_dimension_numbers<[1], [0], [0], [1], [0, 0, 1, 1], [], []>} : vector<2x16xf32>, vector<16x16xf32>, vector<2x16xf32> -> vector<2x16xf32>
    %220 = vector.extract_strided_slice %216 {offsets = [8, 0], sizes = [2, 16], strides = [1, 1]} : vector<24x16xf32> to vector<2x16xf32>
    %c232 = arith.constant 232 : index
    %c0_87 = arith.constant 0 : index
    %221 = vector.load %arg2[%c232, %c0_87] : memref<280x16xf32, #tpu.memory_space<vmem>>, vector<16x16xf32>
    %cst_88 = arith.constant dense<0.000000e+00> : vector<2x16xf32>
    %222 = tpu.matmul %220, %221, %cst_88 {dimension_numbers = #tpu.dot_dimension_numbers<[1], [0], [0], [1], [0, 0, 1, 1], [], []>} : vector<2x16xf32>, vector<16x16xf32>, vector<2x16xf32> -> vector<2x16xf32>
    %223 = arith.addf %219, %222 : vector<2x16xf32>
    %224 = vector.extract_strided_slice %216 {offsets = [16, 0], sizes = [2, 16], strides = [1, 1]} : vector<24x16xf32> to vector<2x16xf32>
    %c248 = arith.constant 248 : index
    %c0_89 = arith.constant 0 : index
    %225 = vector.load %arg2[%c248, %c0_89] : memref<280x16xf32, #tpu.memory_space<vmem>>, vector<16x16xf32>
    %cst_90 = arith.constant dense<0.000000e+00> : vector<2x16xf32>
    %226 = tpu.matmul %224, %225, %cst_90 {dimension_numbers = #tpu.dot_dimension_numbers<[1], [0], [0], [1], [0, 0, 1, 1], [], []>} : vector<2x16xf32>, vector<16x16xf32>, vector<2x16xf32> -> vector<2x16xf32>
    %227 = arith.addf %223, %226 : vector<2x16xf32>
    %c279 = arith.constant 279 : index
    %c0_91 = arith.constant 0 : index
    %228 = vector.load %arg2[%c279, %c0_91] : memref<280x16xf32, #tpu.memory_space<vmem>>, vector<1x16xf32>
    %229 = vector.broadcast %228 : vector<1x16xf32> to vector<2x16xf32>
    %230 = arith.addf %227, %229 : vector<2x16xf32>
    %c0_92 = arith.constant 0 : index
    %c0_93 = arith.constant 0 : index
    %c0_94 = arith.constant 0 : index
    %231 = vector.load %arg4[%c0_92, %c0_93, %c0_94] : memref<1x2x16xf32, #tpu.memory_space<vmem>>, vector<1x2x16xf32>
    %232 = vector.shape_cast %231 : vector<1x2x16xf32> to vector<2x16xf32>
    %233 = vector.shape_cast %230 : vector<2x16xf32> to vector<1x2x16xf32>
    tpu.vector_store %arg4[%c0_92, %c0_93, %c0_94], %233 {strides = array<i32>} : memref<1x2x16xf32, #tpu.memory_space<vmem>>, vector<1x2x16xf32>,
    return
  }
  func.func @transform_0(%arg0: i32) -> (i32, i32, i32) {
    %c0_i32 = arith.constant 0 : i32
    %c0_i32_0 = arith.constant 0 : i32
    %c0_i32_1 = arith.constant 0 : i32
    return %arg0, %c0_i32, %c0_i32_0 : i32, i32, i32
  }
  func.func @transform_1(%arg0: i32) -> (i32, i32) {
    %c0_i32 = arith.constant 0 : i32
    %c0_i32_0 = arith.constant 0 : i32
    %c0_i32_1 = arith.constant 0 : i32
    return %c0_i32, %c0_i32_0 : i32, i32
  }
  func.func @transform_2(%arg0: i32) -> (i32, i32) {
    %c0_i32 = arith.constant 0 : i32
    %c0_i32_0 = arith.constant 0 : i32
    %c0_i32_1 = arith.constant 0 : i32
    return %c0_i32, %c0_i32_0 : i32, i32
  }
  func.func @transform_3(%arg0: i32) -> (i32, i32, i32) {
    %c0_i32 = arith.constant 0 : i32
    %c0_i32_0 = arith.constant 0 : i32
    %c0_i32_1 = arith.constant 0 : i32
    return %arg0, %c0_i32, %c0_i32_0 : i32, i32, i32
  }
}

</mosaic_0001>

<llo_original>
// kernel: tpu_custom_call.1
$region0: #{tpu_custom_call.1}
  #allocation0 [shape = 'u32[]', space=smem, size = 0x4, offset = 0x4, fixed_abs, tag = 'smem constant byte address 0x4 - core index']
  #allocation1 [shape = 'u32[144,128]{1,0:T(1,128)}', space=vmem, size = 0x12000, scoped, tag = 'internal scratch']
  %s0 = inlined_call_operand.vmem [shape: f32[4,16,24], index: 0, kind: input, shape index: {}]
  %s1 = inlined_call_operand.vmem [shape: f32[280,16], index: 1, kind: input, shape index: {}]
  %s2 = inlined_call_operand.vmem [shape: f32[24,16], index: 2, kind: input, shape index: {}]
  %s3 = inlined_call_operand.hbm [shape: f32[4,2,16], index: 3, kind: output, shape index: {}]
  %s4 = sld [smem:[#allocation0]]
  $region45: #{tpu_custom_call.1} parent=0
    _
  %s6 = ssub.s32 1, %s4
  %s7 = scalar_select 0, %s6, %s4
  $region1: #{tpu_custom_call.1} parent=0
    #allocation2 [shape = 'u8[2048]{0}', space=vmem, size = 0x800, scoped, tag = 'output window, operand 0']
    #allocation3 [shape = 's32[2]{0}', space=sflag, size = 0x8, scoped, tag = 'scoped memory for tpu_custom_call.1']
    %8 = vsyncpa [#allocation3], 0
    %s9 = scalar_lea.sflag [#allocation3], 1
    %10 = vsyncpa %s9, 0
    loop: start=0, step=1, limit=6
    $region2: #{tpu_custom_call.1} parent=1 // loop_pre_header
      _
    $region3: #{tpu_custom_call.1} parent=1 // loop_header
      %s12 = sphi 0, %s16
      %p13 = scmp.ge.s32.totalorder %s12, 6
      %s22 = sphi 0, %s24
      %s25 = sphi 0, %s22
      %s26 = sphi 0, %s25
      %s42 = sphi 0, %s26
      %s46 = sphi 0, %s46
      %s48 = sphi 0, %s46
      %s49 = sphi 0, %s48
      %s63 = sphi 0, %s49
      %s67 = sphi 0, %s67
      %s69 = sphi 0, %s67
      %s70 = sphi 0, %s69
      %s84 = sphi 0, %s70
      %s90 = sphi 0, %s92
      %s93 = sphi 0, %s90
      %s94 = sphi 0, %s93
      %s110 = sphi 0, %s94
    $region4: #{tpu_custom_call.1} parent=1 // loop_header_branch
      %15 = sbr.rel (%p13) target = $region8
    $region5: #{tpu_custom_call.1} parent=1 // loop_body
      %s17 = ssub.s32 %s12, 1
      %s18 = ssub.s32 %s12, 2
      %s19 = sadd.s32 %s12, 1
      %s20 = ssub.s32 %s12, %s19
      %p21 = scmp.eq.s32.totalorder %s20, 0
      %s23 = sadd.s32 %s22, 1
      %s24 = scalar_select %p21, %s22, %s23
      %p27 = pneg %p21
      %p28 = scmp.eq.s32.totalorder %s12, 3
      %p29 = por %p27, %p28
      %p30 = scmp.ne.s32.totalorder %s22, %s25
      %p31 = scmp.eq.s32.totalorder %s12, 0
      %p32 = por %p30, %p31
      %p33 = scmp.ne.s32.totalorder %s22, %s25
      %p34 = scmp.eq.s32.totalorder %s17, 3
      %p35 = por %p33, %p34
      %p36 = scmp.ne.s32.totalorder %s25, %s26
      %p37 = scmp.eq.s32.totalorder %s17, 0
      %p38 = por %p36, %p37
      %p39 = scmp.ne.s32.totalorder %s25, %s26
      %p40 = scmp.eq.s32.totalorder %s18, 3
      %p41 = por %p39, %p40
      %p43 = scmp.ne.s32.totalorder %s26, %s42
      %p44 = scmp.eq.s32.totalorder %s18, 0
      %p45 = por %p43, %p44
      %s47 = sadd.s32 %s46, 1
      %p50 = scmp.eq.s32.totalorder %s12, 3
      %p51 = scmp.ne.s32.totalorder %s46, %s48
      %p52 = scmp.eq.s32.totalorder %s12, 0
      %p53 = por %p51, %p52
      %p54 = scmp.ne.s32.totalorder %s46, %s48
      %p55 = scmp.eq.s32.totalorder %s17, 3
      %p56 = por %p54, %p55
      %p57 = scmp.ne.s32.totalorder %s48, %s49
      %p58 = scmp.eq.s32.totalorder %s17, 0
      %p59 = por %p57, %p58
      %p60 = scmp.ne.s32.totalorder %s48, %s49
      %p61 = scmp.eq.s32.totalorder %s18, 3
      %p62 = por %p60, %p61
      %p64 = scmp.ne.s32.totalorder %s49, %s63
      %p65 = scmp.eq.s32.totalorder %s18, 0
      %p66 = por %p64, %p65
      %s68 = sadd.s32 %s67, 1
      %p71 = scmp.eq.s32.totalorder %s12, 3
      %p72 = scmp.ne.s32.totalorder %s67, %s69
      %p73 = scmp.eq.s32.totalorder %s12, 0
      %p74 = por %p72, %p73
      %p75 = scmp.ne.s32.totalorder %s67, %s69
      %p76 = scmp.eq.s32.totalorder %s17, 3
      %p77 = por %p75, %p76
      %p78 = scmp.ne.s32.totalorder %s69, %s70
      %p79 = scmp.eq.s32.totalorder %s17, 0
      %p80 = por %p78, %p79
      %p81 = scmp.ne.s32.totalorder %s69, %s70
      %p82 = scmp.eq.s32.totalorder %s18, 3
      %p83 = por %p81, %p82
      %p85 = scmp.ne.s32.totalorder %s70, %s84
      %p86 = scmp.eq.s32.totalorder %s18, 0
      %p87 = por %p85, %p86
      %s88 = ssub.s32 %s12, %s19
      %p89 = scmp.eq.s32.totalorder %s88, 0
      %s91 = sadd.s32 %s90, 1
      %s92 = scalar_select %p89, %s90, %s91
      %p95 = pneg %p89
      %p96 = scmp.eq.s32.totalorder %s12, 3
      %p97 = por %p95, %p96
      %p98 = scmp.ne.s32.totalorder %s90, %s93
      %p99 = scmp.eq.s32.totalorder %s12, 0
      %p100 = por %p98, %p99
      %p101 = scmp.ne.s32.totalorder %s90, %s93
      %p102 = scmp.eq.s32.totalorder %s17, 3
      %p103 = por %p101, %p102
      %p104 = scmp.ne.s32.totalorder %s93, %s94
      %p105 = scmp.eq.s32.totalorder %s17, 0
      %p106 = por %p104, %p105
      %p107 = scmp.ne.s32.totalorder %s93, %s94
      %p108 = scmp.eq.s32.totalorder %s18, 3
      %p109 = por %p107, %p108
      %p111 = scmp.ne.s32.totalorder %s94, %s110
      %p112 = scmp.eq.s32.totalorder %s18, 0
      %p113 = por %p111, %p112
      %p114 = scmp.le.s32.totalorder 1, %s12
      %p115 = scmp.lt.s32.totalorder %s12, 5
      %p116 = pnand %p114, %p115
      %p117 = pneg %p116
      // Predicated region
      $region9: #{tpu_custom_call.1} parent=5 // pred_check
        _
      $region10: #{tpu_custom_call.1} parent=5 // pred_check_branch
        %119 = sbr.rel (%p116) target = $region12
      $region11: #{tpu_custom_call.1} parent=5 // pred_region
        %s120 = ssub.s32 %s12, 1
        // Predicated region
        $region13: #{tpu_custom_call.1} parent=11 // pred_check
          %p121 = pneg %p59
        $region14: #{tpu_custom_call.1} parent=11 // pred_check_branch
          %123 = sbr.rel (%p121) target = $region16
        $region15: #{tpu_custom_call.1} parent=11 // pred_region
          _
        $region16: #{tpu_custom_call.1} parent=11 // pred_fallthru
          _
        // Predicated region
        $region17: #{tpu_custom_call.1} parent=11 // pred_check
          %p124 = pneg %p80
        $region18: #{tpu_custom_call.1} parent=11 // pred_check_branch
          %126 = sbr.rel (%p124) target = $region20
        $region19: #{tpu_custom_call.1} parent=11 // pred_region
          _
        $region20: #{tpu_custom_call.1} parent=11 // pred_fallthru
          _
      $region12: #{tpu_custom_call.1} parent=5 // pred_fallthru
        _
      %p127 = scmp.lt.s32.totalorder %s12, 4
      // Predicated region
      $region21: #{tpu_custom_call.1} parent=5 // pred_check
        %p128 = pneg %p127
      $region22: #{tpu_custom_call.1} parent=5 // pred_check_branch
        %130 = sbr.rel (%p128) target = $region24
      $region23: #{tpu_custom_call.1} parent=5 // pred_region
        // Predicated region
        $region25: #{tpu_custom_call.1} parent=23 // pred_check
          %p131 = pneg %p32
        $region26: #{tpu_custom_call.1} parent=23 // pred_check_branch
          %133 = sbr.rel (%p131) target = $region28
        $region27: #{tpu_custom_call.1} parent=23 // pred_region
          %p134 = scmp.lt.s32.totalorder %s12, 3
          %s135 = scalar_select %p134, %s12, 3
          %s136 = smul.addr %s135, 2
          %s137 = smul.addr %s136, 8
          %s138 = scalar_lea.vmem %s0, %s137
        $region28: #{tpu_custom_call.1} parent=23 // pred_fallthru
          _
      $region24: #{tpu_custom_call.1} parent=5 // pred_fallthru
        _
      %p139 = scmp.le.s32.totalorder 1, %s12
      %p140 = scmp.lt.s32.totalorder %s12, 5
      %p141 = pnand %p139, %p140
      %p142 = pneg %p141
      // Predicated region
      $region29: #{tpu_custom_call.1} parent=5 // pred_check
        _
      $region30: #{tpu_custom_call.1} parent=5 // pred_check_branch
        %144 = sbr.rel (%p141) target = $region32
      $region31: #{tpu_custom_call.1} parent=5 // pred_region
        %s145 = ssub.s32 %s12, 1
        %p146 = scmp.lt.s32.totalorder %s17, 3
        %s147 = scalar_select %p146, %s17, 3
        %s148 = smul.addr %s147, 2
        %s149 = smul.addr %s148, 8
        %s150 = scalar_lea.vmem %s0, %s149
        %p151 = pneg %p38
        %p152 = pneg %p35
        %p153 = pneg %p59
        %p154 = pneg %p56
        %p155 = pneg %p80
        %p156 = pneg %p77
        %p157 = pneg %p106
        %p158 = pneg %p103
        %s159 = sand.u32 %s93, 1
        %s160 = scalar_lea.sflag [#allocation3], %s159
        %s161 = sand.u32 %s93, 1
        %s162 = smul.addr %s161, 2
        %s163 = scalar_lea.vmem [#allocation2], %s162
        %p164 = scmp.lt.s32.totalorder %s17, 3
        %s165 = scalar_select %p164, %s17, 3
        %s166 = smul.addr %s165, 2
        %s167 = smul.addr %s166, 8
        %s168 = scalar_lea.vmem %s0, %s167
        %v169 = vlaneseq
        %v170 = vshrl.u32 %v169, 7
        %v171 = vadd.s32 %v170, 8
        %vm172 = vcmp.lt.s32.totalorder %v170, 0
        %v173 = vsub.s32 0, %v170
        %v174 = vsel %vm172, %v173, %v170
        %v175 = vshrl.u32 %v174, 3
        %v176 = vand.u32 %v174, 7
        %v177 = vsub.s32 0, %v176
        %v178 = vsel %vm172, %v177, %v176
        %vm179 = vcmp.lt.s32.totalorder %v171, 0
        %v180 = vsub.s32 0, %v171
        %v181 = vsel %vm179, %v180, %v171
        %v182 = vshrl.u32 %v181, 3
        %v183 = vand.u32 %v181, 7
        %v184 = vsub.s32 0, %v183
        %v185 = vsel %vm179, %v184, %v183
        %vm186 = vcmp.ne.s32.totalorder %v178, 0
        %vm187 = vcmp.ne.s32.totalorder %v185, 0
        %vm188 = vcmp.lt.s32.totalorder %v178, 0
        %vm189 = vcmp.lt.s32.totalorder %v185, 0
        %vm190 = vmand %vm188, %vm186
        %vm191 = vmand %vm189, %vm187
        %v192 = vadd.s32 %v178, 8
        %v193 = vadd.s32 %v185, 8
        %v194 = vsel %vm190, %v192, %v178
        %v195 = vsel %vm191, %v193, %v185
        %vm196 = vcmp.ne.s32.totalorder %v194, 0
        %vm197 = vcmp.ne.s32.totalorder %v195, 0
        %v198 = vsel %vm196, 1, 0
        %v199 = vsel %vm197, 1, 0
        %v200 = vcvt.s32.f32 %v198
        %v201 = vcvt.s32.f32 %v199
        %vm202 = vcmp.ne.s32.totalorder %v194, 7
        %vm203 = vcmp.ne.s32.totalorder %v195, 7
        %v204 = vsel %vm202, 1, 0
        %v205 = vsel %vm203, 1, 0
        %v206 = vcvt.s32.f32 %v204
        %v207 = vcvt.s32.f32 %v205
        %v208 = vld [vmem:[%s168] sm:$0xff]
        %v209 = vld [vmem:[%s168 + $0x8] sm:$0xff]
        %v210 = vld [vmem:[%s1] sm:$0xff]
        %v211 = vld [vmem:[%s1 + $0x8] sm:$0xff]
        %v212 = vld [vmem:[%s1 + $0x10] sm:$0xff]
        %v213 = vld [vmem:[%s1 + $0x108] sm:$0x1]
        %v214 = vlaneseq
        %v215 = vshrl.u32 %v214, 7
        %v216 = vsub.s32 0, %v215
        %v217 = vrot.slane %v213, %v216
        %vm218 = vcmask 195584
        %v220 = vsel %vm218, %v208, 0
        %v223 = vsel %vm218, %v209, 0
        %225 = vmatprep.subr.mxu0 0.0
        %226 = vmatpush1.msra.mxu0 %v210
        %227 = vmatprep.subr.mxu0 0.0
        %228 = vmatpush1.msra.mxu0 %v211
        %229 = vmatprep.subr.mxu0 0.0
        %230 = vmatpush1.msra.mxu0 %v212
        %231 = vmatprep.subr.mxu0 0.0
        %232 = vmatpush1.msra.mxu0 0.0
        %233 = vmatprep.subr.mxu0 0.0
        %234 = vmatpush1.msra.mxu0 0.0
        %235 = vmatprep.subr.mxu0 0.0
        %236 = vmatpush1.msra.mxu0 0.0
        %237 = vmatprep.subr.mxu0 0.0
        %238 = vmatpush1.msra.mxu0 0.0
        %239 = vmatprep.subr.mxu0 0.0
        %240 = vmatpush1.msra.mxu0 0.0
        %241 = vmatprep.subr.mxu0 0.0
        %242 = vmatpush1.msra.mxu0 0.0
        %243 = vmatprep.subr.mxu0 0.0
        %244 = vmatpush1.msra.mxu0 0.0
        %245 = vmatprep.subr.mxu0 0.0
        %246 = vmatpush1.msra.mxu0 0.0
        %247 = vmatprep.subr.mxu0 0.0
        %248 = vmatpush1.msra.mxu0 0.0
        %249 = vmatprep.subr.mxu0 0.0
        %250 = vmatpush1.msra.mxu0 0.0
        %251 = vmatprep.subr.mxu0 0.0
        %252 = vmatpush1.msra.mxu0 0.0
        %253 = vmatprep.subr.mxu0 0.0
        %254 = vmatpush1.msra.mxu0 0.0
        %255 = vmatprep.subr.mxu0 0.0
        %256 = vmatpush1.msra.mxu0 0.0
        %257 = vmatprep.subr.mxu0 0.0
        %258 = vmatpush1.msra.mxu0 0.0
        %259 = vmatprep.subr.mxu0 0.0
        %260 = vmatpush1.msra.mxu0 0.0
        %261 = vmatprep.subr.mxu0 0.0
        %262 = vmatpush1.msra.mxu0 0.0
        %263 = vmatprep.subr.mxu0 0.0
        %264 = vmatpush1.msra.mxu0 0.0
        %265 = vmatprep.subr.mxu0 0.0
        %266 = vmatpush1.msra.mxu0 0.0
        %267 = vmatprep.subr.mxu0 0.0
        %268 = vmatpush1.msra.mxu0 0.0
        %269 = vmatprep.subr.mxu0 0.0
        %270 = vmatpush1.msra.mxu0 0.0
        %271 = vmatprep.subr.mxu0 0.0
        %272 = vmatpush1.msra.mxu0 0.0
        %273 = vmatprep.subr.mxu0 0.0
        %274 = vmatpush1.msra.mxu0 0.0
        %275 = vmatprep.subr.mxu0 0.0
        %276 = vmatpush1.msra.mxu0 0.0
        %277 = vmatprep.subr.mxu0 0.0
        %278 = vmatpush1.msra.mxu0 0.0
        %279 = vmatprep.subr.mxu0 0.0
        %280 = vmatpush1.msra.mxu0 0.0
        %281 = vmatprep.subr.mxu0 0.0
        %282 = vmatpush1.msra.mxu0 0.0
        %283 = vmatprep.subr.mxu0 0.0
        %284 = vmatpush1.msra.mxu0 0.0
        %285 = vmatprep.subr.mxu0 0.0
        %286 = vmatpush1.msra.mxu0 0.0
        %287 = vmatprep.subr.mxu0 0.0
        %288 = vmatpush1.msra.mxu0 0.0
        %289 = vmatprep.mubr.f32.mxu0 0.0
        %290 = vmatmul.mubr.f32.gmra.mrb[0].mxu0 %v220
        %v291 = vpop.f32.mrb[0].mxu0
        %v292 = vadd.f32 %v217, %v291
        %v293 = vpop.f32.mrb[0].mxu0
        %294 = vmatprep.mubr.f32.mxu0 0.0
        %295 = vmatmul.mubr.f32.gmra.mrb[0].mxu0 %v223
        %v296 = vpop.f32.mrb[0].mxu0
        %v297 = vadd.f32 %v217, %v296
        %v298 = vpop.f32.mrb[0].mxu0
        %299 = vdwg.mxu0
        %vm300 = vcmask 130048
        %v301 = vsel %vm300, %v292, 0.0
        %v302 = vsel %vm300, %v297, 0.0
        %v303 = vadd.f32 %v301, %v302
        %v304 = vrot.slane %v303, 4
        %v305 = vadd.f32 %v303, %v304
        %v306 = vrot.slane %v305, 2
        %v307 = vadd.f32 %v305, %v306
        %v308 = vrot.slane %v307, 1
        %v309 = vadd.f32 %v307, %v308
        %v310 = vrcp.pop 16.0
        %v311 = vmul.f32 %v309, %v310
        %v312 = vsub.f32 %v292, %v311
        %v313 = vsub.f32 %v297, %v311
        %v314 = vmul.f32 %v312, %v312
        %v315 = vmul.f32 %v313, %v313
        %v316 = vsel %vm300, %v314, 0.0
        %v317 = vsel %vm300, %v315, 0.0
        %v318 = vadd.f32 %v316, %v317
        %v319 = vrot.slane %v318, 4
        %v320 = vadd.f32 %v318, %v319
        %v321 = vrot.slane %v320, 2
        %v322 = vadd.f32 %v320, %v321
        %v323 = vrot.slane %v322, 1
        %v324 = vadd.f32 %v322, %v323
        %v325 = vmul.f32 %v324, %v310
        %v326 = vld [vmem:[%s1 + $0x109] sm:$0x1]
        %v327 = vadd.f32 %v325, 1e-05
        %v328 = vrsqrt.pop %v327
        %v329 = vmul.f32 %v326, %v328
        %v330 = vld [vmem:[%s1 + $0x10a] sm:$0x1]
        %v331 = vmul.f32 %v311, %v329
        %v332 = vsub.f32 %v330, %v331
        %v333 = vlaneseq
        %v334 = vshrl.u32 %v333, 7
        %v335 = vsub.s32 0, %v334
        %v336 = vrot.slane %v329, %v335
        %v337 = vmul.f32 %v292, %v336
        %v338 = vmul.f32 %v297, %v336
        %v339 = vlaneseq
        %v340 = vshrl.u32 %v339, 7
        %v341 = vsub.s32 0, %v340
        %v342 = vrot.slane %v332, %v341
        %v343 = vadd.f32 %v337, %v342
        %v344 = vadd.f32 %v338, %v342
        %v345 = vmax.f32 %v343, 0.0
        %v346 = vmax.f32 %v344, 0.0
        %v347 = vrot.slane %v345, 7
        %v348 = vrot.slane %v346, 7
        %vm349 = vcmp.lt.s32.totalorder %v170, 1
        %v350 = vsel %vm349, %v347, %v348
        %v351 = vsel %vm349, %v348, %v347
        %v352 = vmul.f32 %v351, %v200
        %v353 = vmul.f32 %v350, %v201
        %v354 = vrot.slane %v345, 1
        %v355 = vrot.slane %v346, 1
        %vm356 = vcmp.lt.s32.totalorder %v170, 7
        %v357 = vsel %vm356, %v354, %v355
        %v358 = vsel %vm356, %v355, %v354
        %v359 = vmul.f32 %v357, %v206
        %v360 = vmul.f32 %v358, %v207
        %v361 = vld [vmem:[%s1 + $0x18] sm:$0xff]
        %v362 = vld [vmem:[%s1 + $0x20] sm:$0xff]
        %v363 = vld [vmem:[%s1 + $0x28] sm:$0xff]
        %v364 = vld [vmem:[%s1 + $0x30] sm:$0xff]
        %v366 = vsel %vm300, %v345, 0
        %v369 = vsel %vm300, %v346, 0
        %371 = vmatprep.subr.mxu0 0.0
        %372 = vmatpush1.msra.mxu0 %v363
        %373 = vmatprep.subr.mxu0 0.0
        %374 = vmatpush1.msra.mxu0 %v364
        %375 = vmatprep.subr.mxu0 0.0
        %376 = vmatpush1.msra.mxu0 0.0
        %377 = vmatprep.subr.mxu0 0.0
        %378 = vmatpush1.msra.mxu0 0.0
        %379 = vmatprep.subr.mxu0 0.0
        %380 = vmatpush1.msra.mxu0 0.0
        %381 = vmatprep.subr.mxu0 0.0
        %382 = vmatpush1.msra.mxu0 0.0
        %383 = vmatprep.subr.mxu0 0.0
        %384 = vmatpush1.msra.mxu0 0.0
        %385 = vmatprep.subr.mxu0 0.0
        %386 = vmatpush1.msra.mxu0 0.0
        %387 = vmatprep.subr.mxu0 0.0
        %388 = vmatpush1.msra.mxu0 0.0
        %389 = vmatprep.subr.mxu0 0.0
        %390 = vmatpush1.msra.mxu0 0.0
        %391 = vmatprep.subr.mxu0 0.0
        %392 = vmatpush1.msra.mxu0 0.0
        %393 = vmatprep.subr.mxu0 0.0
        %394 = vmatpush1.msra.mxu0 0.0
        %395 = vmatprep.subr.mxu0 0.0
        %396 = vmatpush1.msra.mxu0 0.0
        %397 = vmatprep.subr.mxu0 0.0
        %398 = vmatpush1.msra.mxu0 0.0
        %399 = vmatprep.subr.mxu0 0.0
        %400 = vmatpush1.msra.mxu0 0.0
        %401 = vmatprep.subr.mxu0 0.0
        %402 = vmatpush1.msra.mxu0 0.0
        %403 = vmatprep.subr.mxu0 0.0
        %404 = vmatpush1.msra.mxu0 0.0
        %405 = vmatprep.subr.mxu0 0.0
        %406 = vmatpush1.msra.mxu0 0.0
        %407 = vmatprep.subr.mxu0 0.0
        %408 = vmatpush1.msra.mxu0 0.0
        %409 = vmatprep.subr.mxu0 0.0
        %410 = vmatpush1.msra.mxu0 0.0
        %411 = vmatprep.subr.mxu0 0.0
        %412 = vmatpush1.msra.mxu0 0.0
        %413 = vmatprep.subr.mxu0 0.0
        %414 = vmatpush1.msra.mxu0 0.0
        %415 = vmatprep.subr.mxu0 0.0
        %416 = vmatpush1.msra.mxu0 0.0
        %417 = vmatprep.subr.mxu0 0.0
        %418 = vmatpush1.msra.mxu0 0.0
        %419 = vmatprep.subr.mxu0 0.0
        %420 = vmatpush1.msra.mxu0 0.0
        %421 = vmatprep.subr.mxu0 0.0
        %422 = vmatpush1.msra.mxu0 0.0
        %423 = vmatprep.subr.mxu0 0.0
        %424 = vmatpush1.msra.mxu0 0.0
        %425 = vmatprep.subr.mxu0 0.0
        %426 = vmatpush1.msra.mxu0 0.0
        %427 = vmatprep.subr.mxu0 0.0
        %428 = vmatpush1.msra.mxu0 0.0
        %429 = vmatprep.subr.mxu0 0.0
        %430 = vmatpush1.msra.mxu0 0.0
        %431 = vmatprep.subr.mxu0 0.0
        %432 = vmatpush1.msra.mxu0 0.0
        %433 = vmatprep.subr.mxu0 0.0
        %434 = vmatpush1.msra.mxu0 0.0
        %435 = vmatprep.mubr.f32.mxu0 0.0
        %436 = vmatmul.mubr.f32.gmra.mrb[0].mxu0 %v366
        %v437 = vpop.f32.mrb[0].mxu0
        %v438 = vadd.f32 0.0, %v437
        %v439 = vpop.f32.mrb[0].mxu0
        %440 = vmatprep.mubr.f32.mxu0 0.0
        %441 = vmatmul.mubr.f32.gmra.mrb[0].mxu0 %v369
        %v442 = vpop.f32.mrb[0].mxu0
        %v443 = vadd.f32 0.0, %v442
        %v444 = vpop.f32.mrb[0].mxu0
        %445 = vdwg.mxu0
        %v447 = vsel %vm300, %v352, 0
        %v450 = vsel %vm300, %v353, 0
        %452 = vmatprep.subr.mxu0 0.0
        %453 = vmatpush1.msra.mxu0 %v361
        %454 = vmatprep.subr.mxu0 0.0
        %455 = vmatpush1.msra.mxu0 %v362
        %456 = vmatprep.subr.mxu0 0.0
        %457 = vmatpush1.msra.mxu0 0.0
        %458 = vmatprep.subr.mxu0 0.0
        %459 = vmatpush1.msra.mxu0 0.0
        %460 = vmatprep.subr.mxu0 0.0
        %461 = vmatpush1.msra.mxu0 0.0
        %462 = vmatprep.subr.mxu0 0.0
        %463 = vmatpush1.msra.mxu0 0.0
        %464 = vmatprep.subr.mxu0 0.0
        %465 = vmatpush1.msra.mxu0 0.0
        %466 = vmatprep.subr.mxu0 0.0
        %467 = vmatpush1.msra.mxu0 0.0
        %468 = vmatprep.subr.mxu0 0.0
        %469 = vmatpush1.msra.mxu0 0.0
        %470 = vmatprep.subr.mxu0 0.0
        %471 = vmatpush1.msra.mxu0 0.0
        %472 = vmatprep.subr.mxu0 0.0
        %473 = vmatpush1.msra.mxu0 0.0
        %474 = vmatprep.subr.mxu0 0.0
        %475 = vmatpush1.msra.mxu0 0.0
        %476 = vmatprep.subr.mxu0 0.0
        %477 = vmatpush1.msra.mxu0 0.0
        %478 = vmatprep.subr.mxu0 0.0
        %479 = vmatpush1.msra.mxu0 0.0
        %480 = vmatprep.subr.mxu0 0.0
        %481 = vmatpush1.msra.mxu0 0.0
        %482 = vmatprep.subr.mxu0 0.0
        %483 = vmatpush1.msra.mxu0 0.0
        %484 = vmatprep.subr.mxu0 0.0
        %485 = vmatpush1.msra.mxu0 0.0
        %486 = vmatprep.subr.mxu0 0.0
        %487 = vmatpush1.msra.mxu0 0.0
        %488 = vmatprep.subr.mxu0 0.0
        %489 = vmatpush1.msra.mxu0 0.0
        %490 = vmatprep.subr.mxu0 0.0
        %491 = vmatpush1.msra.mxu0 0.0
        %492 = vmatprep.subr.mxu0 0.0
        %493 = vmatpush1.msra.mxu0 0.0
        %494 = vmatprep.subr.mxu0 0.0
        %495 = vmatpush1.msra.mxu0 0.0
        %496 = vmatprep.subr.mxu0 0.0
        %497 = vmatpush1.msra.mxu0 0.0
        %498 = vmatprep.subr.mxu0 0.0
        %499 = vmatpush1.msra.mxu0 0.0
        %500 = vmatprep.subr.mxu0 0.0
        %501 = vmatpush1.msra.mxu0 0.0
        %502 = vmatprep.subr.mxu0 0.0
        %503 = vmatpush1.msra.mxu0 0.0
        %504 = vmatprep.subr.mxu0 0.0
        %505 = vmatpush1.msra.mxu0 0.0
        %506 = vmatprep.subr.mxu0 0.0
        %507 = vmatpush1.msra.mxu0 0.0
        %508 = vmatprep.subr.mxu0 0.0
        %509 = vmatpush1.msra.mxu0 0.0
        %510 = vmatprep.subr.mxu0 0.0
        %511 = vmatpush1.msra.mxu0 0.0
        %512 = vmatprep.subr.mxu0 0.0
        %513 = vmatpush1.msra.mxu0 0.0
        %514 = vmatprep.subr.mxu0 0.0
        %515 = vmatpush1.msra.mxu0 0.0
        %516 = vmatprep.mubr.f32.mxu0 0.0
        %517 = vmatmul.mubr.f32.gmra.mrb[0].mxu0 %v447
        %v518 = vpop.f32.mrb[0].mxu0
        %v519 = vadd.f32 %v438, %v518
        %v520 = vpop.f32.mrb[0].mxu0
        %521 = vmatprep.mubr.f32.mxu0 0.0
        %522 = vmatmul.mubr.f32.gmra.mrb[0].mxu0 %v450
        %v523 = vpop.f32.mrb[0].mxu0
        %v524 = vadd.f32 %v443, %v523
        %v525 = vpop.f32.mrb[0].mxu0
        %526 = vdwg.mxu0
        %v527 = vld [vmem:[%s1 + $0x38] sm:$0xff]
        %v528 = vld [vmem:[%s1 + $0x40] sm:$0xff]
        %v530 = vsel %vm300, %v359, 0
        %v533 = vsel %vm300, %v360, 0
        %535 = vmatprep.subr.mxu0 0.0
        %536 = vmatpush1.msra.mxu0 %v527
        %537 = vmatprep.subr.mxu0 0.0
        %538 = vmatpush1.msra.mxu0 %v528
        %539 = vmatprep.subr.mxu0 0.0
        %540 = vmatpush1.msra.mxu0 0.0
        %541 = vmatprep.subr.mxu0 0.0
        %542 = vmatpush1.msra.mxu0 0.0
        %543 = vmatprep.subr.mxu0 0.0
        %544 = vmatpush1.msra.mxu0 0.0
        %545 = vmatprep.subr.mxu0 0.0
        %546 = vmatpush1.msra.mxu0 0.0
        %547 = vmatprep.subr.mxu0 0.0
        %548 = vmatpush1.msra.mxu0 0.0
        %549 = vmatprep.subr.mxu0 0.0
        %550 = vmatpush1.msra.mxu0 0.0
        %551 = vmatprep.subr.mxu0 0.0
        %552 = vmatpush1.msra.mxu0 0.0
        %553 = vmatprep.subr.mxu0 0.0
        %554 = vmatpush1.msra.mxu0 0.0
        %555 = vmatprep.subr.mxu0 0.0
        %556 = vmatpush1.msra.mxu0 0.0
        %557 = vmatprep.subr.mxu0 0.0
        %558 = vmatpush1.msra.mxu0 0.0
        %559 = vmatprep.subr.mxu0 0.0
        %560 = vmatpush1.msra.mxu0 0.0
        %561 = vmatprep.subr.mxu0 0.0
        %562 = vmatpush1.msra.mxu0 0.0
        %563 = vmatprep.subr.mxu0 0.0
        %564 = vmatpush1.msra.mxu0 0.0
        %565 = vmatprep.subr.mxu0 0.0
        %566 = vmatpush1.msra.mxu0 0.0
        %567 = vmatprep.subr.mxu0 0.0
        %568 = vmatpush1.msra.mxu0 0.0
        %569 = vmatprep.subr.mxu0 0.0
        %570 = vmatpush1.msra.mxu0 0.0
        %571 = vmatprep.subr.mxu0 0.0
        %572 = vmatpush1.msra.mxu0 0.0
        %573 = vmatprep.subr.mxu0 0.0
        %574 = vmatpush1.msra.mxu0 0.0
        %575 = vmatprep.subr.mxu0 0.0
        %576 = vmatpush1.msra.mxu0 0.0
        %577 = vmatprep.subr.mxu0 0.0
        %578 = vmatpush1.msra.mxu0 0.0
        %579 = vmatprep.subr.mxu0 0.0
        %580 = vmatpush1.msra.mxu0 0.0
        %581 = vmatprep.subr.mxu0 0.0
        %582 = vmatpush1.msra.mxu0 0.0
        %583 = vmatprep.subr.mxu0 0.0
        %584 = vmatpush1.msra.mxu0 0.0
        %585 = vmatprep.subr.mxu0 0.0
        %586 = vmatpush1.msra.mxu0 0.0
        %587 = vmatprep.subr.mxu0 0.0
        %588 = vmatpush1.msra.mxu0 0.0
        %589 = vmatprep.subr.mxu0 0.0
        %590 = vmatpush1.msra.mxu0 0.0
        %591 = vmatprep.subr.mxu0 0.0
        %592 = vmatpush1.msra.mxu0 0.0
        %593 = vmatprep.subr.mxu0 0.0
        %594 = vmatpush1.msra.mxu0 0.0
        %595 = vmatprep.subr.mxu0 0.0
        %596 = vmatpush1.msra.mxu0 0.0
        %597 = vmatprep.subr.mxu0 0.0
        %598 = vmatpush1.msra.mxu0 0.0
        %599 = vmatprep.mubr.f32.mxu0 0.0
        %600 = vmatmul.mubr.f32.gmra.mrb[0].mxu0 %v530
        %v601 = vpop.f32.mrb[0].mxu0
        %v602 = vadd.f32 0.0, %v601
        %v603 = vpop.f32.mrb[0].mxu0
        %604 = vmatprep.mubr.f32.mxu0 0.0
        %605 = vmatmul.mubr.f32.gmra.mrb[0].mxu0 %v533
        %v606 = vpop.f32.mrb[0].mxu0
        %v607 = vadd.f32 0.0, %v606
        %v608 = vpop.f32.mrb[0].mxu0
        %609 = vdwg.mxu0
        %v610 = vadd.f32 %v519, %v602
        %v611 = vadd.f32 %v524, %v607
        %v612 = vld [vmem:[%s1 + $0x10b] sm:$0x1]
        %v613 = vlaneseq
        %v614 = vshrl.u32 %v613, 7
        %v615 = vsub.s32 0, %v614
        %v616 = vrot.slane %v612, %v615
        %v617 = vadd.f32 %v610, %v616
        %v618 = vadd.f32 %v611, %v616
        %v619 = vsel %vm300, %v617, 0.0
        %v620 = vsel %vm300, %v618, 0.0
        %v621 = vadd.f32 %v619, %v620
        %v622 = vrot.slane %v621, 4
        %v623 = vadd.f32 %v621, %v622
        %v624 = vrot.slane %v623, 2
        %v625 = vadd.f32 %v623, %v624
        %v626 = vrot.slane %v625, 1
        %v627 = vadd.f32 %v625, %v626
        %v628 = vmul.f32 %v627, %v310
        %v629 = vsub.f32 %v617, %v628
        %v630 = vsub.f32 %v618, %v628
        %v631 = vmul.f32 %v629, %v629
        %v632 = vmul.f32 %v630, %v630
        %v633 = vsel %vm300, %v631, 0.0
        %v634 = vsel %vm300, %v632, 0.0
        %v635 = vadd.f32 %v633, %v634
        %v636 = vrot.slane %v635, 4
        %v637 = vadd.f32 %v635, %v636
        %v638 = vrot.slane %v637, 2
        %v639 = vadd.f32 %v637, %v638
        %v640 = vrot.slane %v639, 1
        %v641 = vadd.f32 %v639, %v640
        %v642 = vmul.f32 %v641, %v310
        %v643 = vld [vmem:[%s1 + $0x10c] sm:$0x1]
        %v644 = vadd.f32 %v642, 1e-05
        %v645 = vrsqrt.pop %v644
        %v646 = vmul.f32 %v643, %v645
        %v647 = vld [vmem:[%s1 + $0x10d] sm:$0x1]
        %v648 = vmul.f32 %v628, %v646
        %v649 = vsub.f32 %v647, %v648
        %v650 = vlaneseq
        %v651 = vshrl.u32 %v650, 7
        %v652 = vsub.s32 0, %v651
        %v653 = vrot.slane %v646, %v652
        %v654 = vmul.f32 %v617, %v653
        %v655 = vmul.f32 %v618, %v653
        %v656 = vlaneseq
        %v657 = vshrl.u32 %v656, 7
        %v658 = vsub.s32 0, %v657
        %v659 = vrot.slane %v649, %v658
        %v660 = vadd.f32 %v654, %v659
        %v661 = vadd.f32 %v655, %v659
        %v662 = vmax.f32 %v660, 0.0
        %v663 = vmax.f32 %v661, 0.0
        %v664 = vrot.slane %v662, 7
        %v665 = vrot.slane %v663, 7
        %v666 = vsel %vm349, %v664, %v665
        %v667 = vsel %vm349, %v665, %v664
        %v668 = vmul.f32 %v667, %v200
        %v669 = vmul.f32 %v666, %v201
        %v670 = vrot.slane %v662, 1
        %v671 = vrot.slane %v663, 1
        %v672 = vsel %vm356, %v670, %v671
        %v673 = vsel %vm356, %v671, %v670
        %v674 = vmul.f32 %v672, %v206
        %v675 = vmul.f32 %v673, %v207
        %v676 = vld [vmem:[%s1 + $0x48] sm:$0xff]
        %v677 = vld [vmem:[%s1 + $0x50] sm:$0xff]
        %v678 = vld [vmem:[%s1 + $0x58] sm:$0xff]
        %v679 = vld [vmem:[%s1 + $0x60] sm:$0xff]
        %v681 = vsel %vm300, %v662, 0
        %v684 = vsel %vm300, %v663, 0
        %686 = vmatprep.subr.mxu0 0.0
        %687 = vmatpush1.msra.mxu0 %v678
        %688 = vmatprep.subr.mxu0 0.0
        %689 = vmatpush1.msra.mxu0 %v679
        %690 = vmatprep.subr.mxu0 0.0
        %691 = vmatpush1.msra.mxu0 0.0
        %692 = vmatprep.subr.mxu0 0.0
        %693 = vmatpush1.msra.mxu0 0.0
        %694 = vmatprep.subr.mxu0 0.0
        %695 = vmatpush1.msra.mxu0 0.0
        %696 = vmatprep.subr.mxu0 0.0
        %697 = vmatpush1.msra.mxu0 0.0
        %698 = vmatprep.subr.mxu0 0.0
        %699 = vmatpush1.msra.mxu0 0.0
        %700 = vmatprep.subr.mxu0 0.0
        %701 = vmatpush1.msra.mxu0 0.0
        %702 = vmatprep.subr.mxu0 0.0
        %703 = vmatpush1.msra.mxu0 0.0
        %704 = vmatprep.subr.mxu0 0.0
        %705 = vmatpush1.msra.mxu0 0.0
        %706 = vmatprep.subr.mxu0 0.0
        %707 = vmatpush1.msra.mxu0 0.0
        %708 = vmatprep.subr.mxu0 0.0
        %709 = vmatpush1.msra.mxu0 0.0
        %710 = vmatprep.subr.mxu0 0.0
        %711 = vmatpush1.msra.mxu0 0.0
        %712 = vmatprep.subr.mxu0 0.0
        %713 = vmatpush1.msra.mxu0 0.0
        %714 = vmatprep.subr.mxu0 0.0
        %715 = vmatpush1.msra.mxu0 0.0
        %716 = vmatprep.subr.mxu0 0.0
        %717 = vmatpush1.msra.mxu0 0.0
        %718 = vmatprep.subr.mxu0 0.0
        %719 = vmatpush1.msra.mxu0 0.0
        %720 = vmatprep.subr.mxu0 0.0
        %721 = vmatpush1.msra.mxu0 0.0
        %722 = vmatprep.subr.mxu0 0.0
        %723 = vmatpush1.msra.mxu0 0.0
        %724 = vmatprep.subr.mxu0 0.0
        %725 = vmatpush1.msra.mxu0 0.0
        %726 = vmatprep.subr.mxu0 0.0
        %727 = vmatpush1.msra.mxu0 0.0
        %728 = vmatprep.subr.mxu0 0.0
        %729 = vmatpush1.msra.mxu0 0.0
        %730 = vmatprep.subr.mxu0 0.0
        %731 = vmatpush1.msra.mxu0 0.0
        %732 = vmatprep.subr.mxu0 0.0
        %733 = vmatpush1.msra.mxu0 0.0
        %734 = vmatprep.subr.mxu0 0.0
        %735 = vmatpush1.msra.mxu0 0.0
        %736 = vmatprep.subr.mxu0 0.0
        %737 = vmatpush1.msra.mxu0 0.0
        %738 = vmatprep.subr.mxu0 0.0
        %739 = vmatpush1.msra.mxu0 0.0
        %740 = vmatprep.subr.mxu0 0.0
        %741 = vmatpush1.msra.mxu0 0.0
        %742 = vmatprep.subr.mxu0 0.0
        %743 = vmatpush1.msra.mxu0 0.0
        %744 = vmatprep.subr.mxu0 0.0
        %745 = vmatpush1.msra.mxu0 0.0
        %746 = vmatprep.subr.mxu0 0.0
        %747 = vmatpush1.msra.mxu0 0.0
        %748 = vmatprep.subr.mxu0 0.0
        %749 = vmatpush1.msra.mxu0 0.0
        %750 = vmatprep.mubr.f32.mxu0 0.0
        %751 = vmatmul.mubr.f32.gmra.mrb[0].mxu0 %v681
        %v752 = vpop.f32.mrb[0].mxu0
        %v753 = vadd.f32 0.0, %v752
        %v754 = vpop.f32.mrb[0].mxu0
        %755 = vmatprep.mubr.f32.mxu0 0.0
        %756 = vmatmul.mubr.f32.gmra.mrb[0].mxu0 %v684
        %v757 = vpop.f32.mrb[0].mxu0
        %v758 = vadd.f32 0.0, %v757
        %v759 = vpop.f32.mrb[0].mxu0
        %760 = vdwg.mxu0
        %v762 = vsel %vm300, %v668, 0
        %v765 = vsel %vm300, %v669, 0
        %767 = vmatprep.subr.mxu0 0.0
        %768 = vmatpush1.msra.mxu0 %v676
        %769 = vmatprep.subr.mxu0 0.0
        %770 = vmatpush1.msra.mxu0 %v677
        %771 = vmatprep.subr.mxu0 0.0
        %772 = vmatpush1.msra.mxu0 0.0
        %773 = vmatprep.subr.mxu0 0.0
        %774 = vmatpush1.msra.mxu0 0.0
        %775 = vmatprep.subr.mxu0 0.0
        %776 = vmatpush1.msra.mxu0 0.0
        %777 = vmatprep.subr.mxu0 0.0
        %778 = vmatpush1.msra.mxu0 0.0
        %779 = vmatprep.subr.mxu0 0.0
        %780 = vmatpush1.msra.mxu0 0.0
        %781 = vmatprep.subr.mxu0 0.0
        %782 = vmatpush1.msra.mxu0 0.0
        %783 = vmatprep.subr.mxu0 0.0
        %784 = vmatpush1.msra.mxu0 0.0
        %785 = vmatprep.subr.mxu0 0.0
        %786 = vmatpush1.msra.mxu0 0.0
        %787 = vmatprep.subr.mxu0 0.0
        %788 = vmatpush1.msra.mxu0 0.0
        %789 = vmatprep.subr.mxu0 0.0
        %790 = vmatpush1.msra.mxu0 0.0
        %791 = vmatprep.subr.mxu0 0.0
        %792 = vmatpush1.msra.mxu0 0.0
        %793 = vmatprep.subr.mxu0 0.0
        %794 = vmatpush1.msra.mxu0 0.0
        %795 = vmatprep.subr.mxu0 0.0
        %796 = vmatpush1.msra.mxu0 0.0
        %797 = vmatprep.subr.mxu0 0.0
        %798 = vmatpush1.msra.mxu0 0.0
        %799 = vmatprep.subr.mxu0 0.0
        %800 = vmatpush1.msra.mxu0 0.0
        %801 = vmatprep.subr.mxu0 0.0
        %802 = vmatpush1.msra.mxu0 0.0
        %803 = vmatprep.subr.mxu0 0.0
        %804 = vmatpush1.msra.mxu0 0.0
        %805 = vmatprep.subr.mxu0 0.0
        %806 = vmatpush1.msra.mxu0 0.0
        %807 = vmatprep.subr.mxu0 0.0
        %808 = vmatpush1.msra.mxu0 0.0
        %809 = vmatprep.subr.mxu0 0.0
        %810 = vmatpush1.msra.mxu0 0.0
        %811 = vmatprep.subr.mxu0 0.0
        %812 = vmatpush1.msra.mxu0 0.0
        %813 = vmatprep.subr.mxu0 0.0
        %814 = vmatpush1.msra.mxu0 0.0
        %815 = vmatprep.subr.mxu0 0.0
        %816 = vmatpush1.msra.mxu0 0.0
        %817 = vmatprep.subr.mxu0 0.0
        %818 = vmatpush1.msra.mxu0 0.0
        %819 = vmatprep.subr.mxu0 0.0
        %820 = vmatpush1.msra.mxu0 0.0
        %821 = vmatprep.subr.mxu0 0.0
        %822 = vmatpush1.msra.mxu0 0.0
        %823 = vmatprep.subr.mxu0 0.0
        %824 = vmatpush1.msra.mxu0 0.0
        %825 = vmatprep.subr.mxu0 0.0
        %826 = vmatpush1.msra.mxu0 0.0
        %827 = vmatprep.subr.mxu0 0.0
        %828 = vmatpush1.msra.mxu0 0.0
        %829 = vmatprep.subr.mxu0 0.0
        %830 = vmatpush1.msra.mxu0 0.0
        %831 = vmatprep.mubr.f32.mxu0 0.0
        %832 = vmatmul.mubr.f32.gmra.mrb[0].mxu0 %v762
        %v833 = vpop.f32.mrb[0].mxu0
        %v834 = vadd.f32 %v753, %v833
        %v835 = vpop.f32.mrb[0].mxu0
        %836 = vmatprep.mubr.f32.mxu0 0.0
        %837 = vmatmul.mubr.f32.gmra.mrb[0].mxu0 %v765
        %v838 = vpop.f32.mrb[0].mxu0
        %v839 = vadd.f32 %v758, %v838
        %v840 = vpop.f32.mrb[0].mxu0
        %841 = vdwg.mxu0
        %v842 = vld [vmem:[%s1 + $0x68] sm:$0xff]
        %v843 = vld [vmem:[%s1 + $0x70] sm:$0xff]
        %v845 = vsel %vm300, %v674, 0
        %v848 = vsel %vm300, %v675, 0
        %850 = vmatprep.subr.mxu0 0.0
        %851 = vmatpush1.msra.mxu0 %v842
        %852 = vmatprep.subr.mxu0 0.0
        %853 = vmatpush1.msra.mxu0 %v843
        %854 = vmatprep.subr.mxu0 0.0
        %855 = vmatpush1.msra.mxu0 0.0
        %856 = vmatprep.subr.mxu0 0.0
        %857 = vmatpush1.msra.mxu0 0.0
        %858 = vmatprep.subr.mxu0 0.0
        %859 = vmatpush1.msra.mxu0 0.0
        %860 = vmatprep.subr.mxu0 0.0
        %861 = vmatpush1.msra.mxu0 0.0
        %862 = vmatprep.subr.mxu0 0.0
        %863 = vmatpush1.msra.mxu0 0.0
        %864 = vmatprep.subr.mxu0 0.0
        %865 = vmatpush1.msra.mxu0 0.0
        %866 = vmatprep.subr.mxu0 0.0
        %867 = vmatpush1.msra.mxu0 0.0
        %868 = vmatprep.subr.mxu0 0.0
        %869 = vmatpush1.msra.mxu0 0.0
        %870 = vmatprep.subr.mxu0 0.0
        %871 = vmatpush1.msra.mxu0 0.0
        %872 = vmatprep.subr.mxu0 0.0
        %873 = vmatpush1.msra.mxu0 0.0
        %874 = vmatprep.subr.mxu0 0.0
        %875 = vmatpush1.msra.mxu0 0.0
        %876 = vmatprep.subr.mxu0 0.0
        %877 = vmatpush1.msra.mxu0 0.0
        %878 = vmatprep.subr.mxu0 0.0
        %879 = vmatpush1.msra.mxu0 0.0
        %880 = vmatprep.subr.mxu0 0.0
        %881 = vmatpush1.msra.mxu0 0.0
        %882 = vmatprep.subr.mxu0 0.0
        %883 = vmatpush1.msra.mxu0 0.0
        %884 = vmatprep.subr.mxu0 0.0
        %885 = vmatpush1.msra.mxu0 0.0
        %886 = vmatprep.subr.mxu0 0.0
        %887 = vmatpush1.msra.mxu0 0.0
        %888 = vmatprep.subr.mxu0 0.0
        %889 = vmatpush1.msra.mxu0 0.0
        %890 = vmatprep.subr.mxu0 0.0
        %891 = vmatpush1.msra.mxu0 0.0
        %892 = vmatprep.subr.mxu0 0.0
        %893 = vmatpush1.msra.mxu0 0.0
        %894 = vmatprep.subr.mxu0 0.0
        %895 = vmatpush1.msra.mxu0 0.0
        %896 = vmatprep.subr.mxu0 0.0
        %897 = vmatpush1.msra.mxu0 0.0
        %898 = vmatprep.subr.mxu0 0.0
        %899 = vmatpush1.msra.mxu0 0.0
        %900 = vmatprep.subr.mxu0 0.0
        %901 = vmatpush1.msra.mxu0 0.0
        %902 = vmatprep.subr.mxu0 0.0
        %903 = vmatpush1.msra.mxu0 0.0
        %904 = vmatprep.subr.mxu0 0.0
        %905 = vmatpush1.msra.mxu0 0.0
        %906 = vmatprep.subr.mxu0 0.0
        %907 = vmatpush1.msra.mxu0 0.0
        %908 = vmatprep.subr.mxu0 0.0
        %909 = vmatpush1.msra.mxu0 0.0
        %910 = vmatprep.subr.mxu0 0.0
        %911 = vmatpush1.msra.mxu0 0.0
        %912 = vmatprep.subr.mxu0 0.0
        %913 = vmatpush1.msra.mxu0 0.0
        %914 = vmatprep.mubr.f32.mxu0 0.0
        %915 = vmatmul.mubr.f32.gmra.mrb[0].mxu0 %v845
        %v916 = vpop.f32.mrb[0].mxu0
        %v917 = vadd.f32 0.0, %v916
        %v918 = vpop.f32.mrb[0].mxu0
        %919 = vmatprep.mubr.f32.mxu0 0.0
        %920 = vmatmul.mubr.f32.gmra.mrb[0].mxu0 %v848
        %v921 = vpop.f32.mrb[0].mxu0
        %v922 = vadd.f32 0.0, %v921
        %v923 = vpop.f32.mrb[0].mxu0
        %924 = vdwg.mxu0
        %v925 = vadd.f32 %v834, %v917
        %v926 = vadd.f32 %v839, %v922
        %v927 = vld [vmem:[%s1 + $0x10e] sm:$0x1]
        %v928 = vlaneseq
        %v929 = vshrl.u32 %v928, 7
        %v930 = vsub.s32 0, %v929
        %v931 = vrot.slane %v927, %v930
        %v932 = vadd.f32 %v925, %v931
        %v933 = vadd.f32 %v926, %v931
        %v934 = vsel %vm300, %v932, 0.0
        %v935 = vsel %vm300, %v933, 0.0
        %v936 = vadd.f32 %v934, %v935
        %v937 = vrot.slane %v936, 4
        %v938 = vadd.f32 %v936, %v937
        %v939 = vrot.slane %v938, 2
        %v940 = vadd.f32 %v938, %v939
        %v941 = vrot.slane %v940, 1
        %v942 = vadd.f32 %v940, %v941
        %v943 = vmul.f32 %v942, %v310
        %v944 = vsub.f32 %v932, %v943
        %v945 = vsub.f32 %v933, %v943
        %v946 = vmul.f32 %v944, %v944
        %v947 = vmul.f32 %v945, %v945
        %v948 = vsel %vm300, %v946, 0.0
        %v949 = vsel %vm300, %v947, 0.0
        %v950 = vadd.f32 %v948, %v949
        %v951 = vrot.slane %v950, 4
        %v952 = vadd.f32 %v950, %v951
        %v953 = vrot.slane %v952, 2
        %v954 = vadd.f32 %v952, %v953
        %v955 = vrot.slane %v954, 1
        %v956 = vadd.f32 %v954, %v955
        %v957 = vmul.f32 %v956, %v310
        %v958 = vld [vmem:[%s1 + $0x10f] sm:$0x1]
        %v959 = vadd.f32 %v957, 1e-05
        %v960 = vrsqrt.pop %v959
        %v961 = vmul.f32 %v958, %v960
        %v962 = vld [vmem:[%s1 + $0x110] sm:$0x1]
        %v963 = vmul.f32 %v943, %v961
        %v964 = vsub.f32 %v962, %v963
        %v965 = vlaneseq
        %v966 = vshrl.u32 %v965, 7
        %v967 = vsub.s32 0, %v966
        %v968 = vrot.slane %v961, %v967
        %v969 = vmul.f32 %v932, %v968
        %v970 = vmul.f32 %v933, %v968
        %v971 = vlaneseq
        %v972 = vshrl.u32 %v971, 7
        %v973 = vsub.s32 0, %v972
        %v974 = vrot.slane %v964, %v973
        %v975 = vadd.f32 %v969, %v974
        %v976 = vadd.f32 %v970, %v974
        %v977 = vadd.f32 %v975, %v345
        %v978 = vadd.f32 %v976, %v346
        %v979 = vrot.slane %v977, 7
        %v980 = vrot.slane %v978, 7
        %v981 = vsel %vm349, %v979, %v980
        %v982 = vsel %vm349, %v980, %v979
        %v983 = vmul.f32 %v982, %v200
        %v984 = vmul.f32 %v981, %v201
        %v985 = vrot.slane %v977, 1
        %v986 = vrot.slane %v978, 1
        %v987 = vsel %vm356, %v985, %v986
        %v988 = vsel %vm356, %v986, %v985
        %v989 = vmul.f32 %v987, %v206
        %v990 = vmul.f32 %v988, %v207
        %v991 = vld [vmem:[%s1 + $0x78] sm:$0xff]
        %v992 = vld [vmem:[%s1 + $0x80] sm:$0xff]
        %v993 = vld [vmem:[%s1 + $0x88] sm:$0xff]
        %v994 = vld [vmem:[%s1 + $0x90] sm:$0xff]
        %v996 = vsel %vm300, %v977, 0
        %v999 = vsel %vm300, %v978, 0
        %1001 = vmatprep.subr.mxu0 0.0
        %1002 = vmatpush1.msra.mxu0 %v993
        %1003 = vmatprep.subr.mxu0 0.0
        %1004 = vmatpush1.msra.mxu0 %v994
        %1005 = vmatprep.subr.mxu0 0.0
        %1006 = vmatpush1.msra.mxu0 0.0
        %1007 = vmatprep.subr.mxu0 0.0
        %1008 = vmatpush1.msra.mxu0 0.0
        %1009 = vmatprep.subr.mxu0 0.0
        %1010 = vmatpush1.msra.mxu0 0.0
        %1011 = vmatprep.subr.mxu0 0.0
        %1012 = vmatpush1.msra.mxu0 0.0
        %1013 = vmatprep.subr.mxu0 0.0
        %1014 = vmatpush1.msra.mxu0 0.0
        %1015 = vmatprep.subr.mxu0 0.0
        %1016 = vmatpush1.msra.mxu0 0.0
        %1017 = vmatprep.subr.mxu0 0.0
        %1018 = vmatpush1.msra.mxu0 0.0
        %1019 = vmatprep.subr.mxu0 0.0
        %1020 = vmatpush1.msra.mxu0 0.0
        %1021 = vmatprep.subr.mxu0 0.0
        %1022 = vmatpush1.msra.mxu0 0.0
        %1023 = vmatprep.subr.mxu0 0.0
        %1024 = vmatpush1.msra.mxu0 0.0
        %1025 = vmatprep.subr.mxu0 0.0
        %1026 = vmatpush1.msra.mxu0 0.0
        %1027 = vmatprep.subr.mxu0 0.0
        %1028 = vmatpush1.msra.mxu0 0.0
        %1029 = vmatprep.subr.mxu0 0.0
        %1030 = vmatpush1.msra.mxu0 0.0
        %1031 = vmatprep.subr.mxu0 0.0
        %1032 = vmatpush1.msra.mxu0 0.0
        %1033 = vmatprep.subr.mxu0 0.0
        %1034 = vmatpush1.msra.mxu0 0.0
        %1035 = vmatprep.subr.mxu0 0.0
        %1036 = vmatpush1.msra.mxu0 0.0
        %1037 = vmatprep.subr.mxu0 0.0
        %1038 = vmatpush1.msra.mxu0 0.0
        %1039 = vmatprep.subr.mxu0 0.0
        %1040 = vmatpush1.msra.mxu0 0.0
        %1041 = vmatprep.subr.mxu0 0.0
        %1042 = vmatpush1.msra.mxu0 0.0
        %1043 = vmatprep.subr.mxu0 0.0
        %1044 = vmatpush1.msra.mxu0 0.0
        %1045 = vmatprep.subr.mxu0 0.0
        %1046 = vmatpush1.msra.mxu0 0.0
        %1047 = vmatprep.subr.mxu0 0.0
        %1048 = vmatpush1.msra.mxu0 0.0
        %1049 = vmatprep.subr.mxu0 0.0
        %1050 = vmatpush1.msra.mxu0 0.0
        %1051 = vmatprep.subr.mxu0 0.0
        %1052 = vmatpush1.msra.mxu0 0.0
        %1053 = vmatprep.subr.mxu0 0.0
        %1054 = vmatpush1.msra.mxu0 0.0
        %1055 = vmatprep.subr.mxu0 0.0
        %1056 = vmatpush1.msra.mxu0 0.0
        %1057 = vmatprep.subr.mxu0 0.0
        %1058 = vmatpush1.msra.mxu0 0.0
        %1059 = vmatprep.subr.mxu0 0.0
        %1060 = vmatpush1.msra.mxu0 0.0
        %1061 = vmatprep.subr.mxu0 0.0
        %1062 = vmatpush1.msra.mxu0 0.0
        %1063 = vmatprep.subr.mxu0 0.0
        %1064 = vmatpush1.msra.mxu0 0.0
        %1065 = vmatprep.mubr.f32.mxu0 0.0
        %1066 = vmatmul.mubr.f32.gmra.mrb[0].mxu0 %v996
        %v1067 = vpop.f32.mrb[0].mxu0
        %v1068 = vadd.f32 0.0, %v1067
        %v1069 = vpop.f32.mrb[0].mxu0
        %1070 = vmatprep.mubr.f32.mxu0 0.0
        %1071 = vmatmul.mubr.f32.gmra.mrb[0].mxu0 %v999
        %v1072 = vpop.f32.mrb[0].mxu0
        %v1073 = vadd.f32 0.0, %v1072
        %v1074 = vpop.f32.mrb[0].mxu0
        %1075 = vdwg.mxu0
        %v1077 = vsel %vm300, %v983, 0
        %v1080 = vsel %vm300, %v984, 0
        %1082 = vmatprep.subr.mxu0 0.0
        %1083 = vmatpush1.msra.mxu0 %v991
        %1084 = vmatprep.subr.mxu0 0.0
        %1085 = vmatpush1.msra.mxu0 %v992
        %1086 = vmatprep.subr.mxu0 0.0
        %1087 = vmatpush1.msra.mxu0 0.0
        %1088 = vmatprep.subr.mxu0 0.0
        %1089 = vmatpush1.msra.mxu0 0.0
        %1090 = vmatprep.subr.mxu0 0.0
        %1091 = vmatpush1.msra.mxu0 0.0
        %1092 = vmatprep.subr.mxu0 0.0
        %1093 = vmatpush1.msra.mxu0 0.0
        %1094 = vmatprep.subr.mxu0 0.0
        %1095 = vmatpush1.msra.mxu0 0.0
        %1096 = vmatprep.subr.mxu0 0.0
        %1097 = vmatpush1.msra.mxu0 0.0
        %1098 = vmatprep.subr.mxu0 0.0
        %1099 = vmatpush1.msra.mxu0 0.0
        %1100 = vmatprep.subr.mxu0 0.0
        %1101 = vmatpush1.msra.mxu0 0.0
        %1102 = vmatprep.subr.mxu0 0.0
        %1103 = vmatpush1.msra.mxu0 0.0
        %1104 = vmatprep.subr.mxu0 0.0
        %1105 = vmatpush1.msra.mxu0 0.0
        %1106 = vmatprep.subr.mxu0 0.0
        %1107 = vmatpush1.msra.mxu0 0.0
        %1108 = vmatprep.subr.mxu0 0.0
        %1109 = vmatpush1.msra.mxu0 0.0
        %1110 = vmatprep.subr.mxu0 0.0
        %1111 = vmatpush1.msra.mxu0 0.0
        %1112 = vmatprep.subr.mxu0 0.0
        %1113 = vmatpush1.msra.mxu0 0.0
        %1114 = vmatprep.subr.mxu0 0.0
        %1115 = vmatpush1.msra.mxu0 0.0
        %1116 = vmatprep.subr.mxu0 0.0
        %1117 = vmatpush1.msra.mxu0 0.0
        %1118 = vmatprep.subr.mxu0 0.0
        %1119 = vmatpush1.msra.mxu0 0.0
        %1120 = vmatprep.subr.mxu0 0.0
        %1121 = vmatpush1.msra.mxu0 0.0
        %1122 = vmatprep.subr.mxu0 0.0
        %1123 = vmatpush1.msra.mxu0 0.0
        %1124 = vmatprep.subr.mxu0 0.0
        %1125 = vmatpush1.msra.mxu0 0.0
        %1126 = vmatprep.subr.mxu0 0.0
        %1127 = vmatpush1.msra.mxu0 0.0
        %1128 = vmatprep.subr.mxu0 0.0
        %1129 = vmatpush1.msra.mxu0 0.0
        %1130 = vmatprep.subr.mxu0 0.0
        %1131 = vmatpush1.msra.mxu0 0.0
        %1132 = vmatprep.subr.mxu0 0.0
        %1133 = vmatpush1.msra.mxu0 0.0
        %1134 = vmatprep.subr.mxu0 0.0
        %1135 = vmatpush1.msra.mxu0 0.0
        %1136 = vmatprep.subr.mxu0 0.0
        %1137 = vmatpush1.msra.mxu0 0.0
        %1138 = vmatprep.subr.mxu0 0.0
        %1139 = vmatpush1.msra.mxu0 0.0
        %1140 = vmatprep.subr.mxu0 0.0
        %1141 = vmatpush1.msra.mxu0 0.0
        %1142 = vmatprep.subr.mxu0 0.0
        %1143 = vmatpush1.msra.mxu0 0.0
        %1144 = vmatprep.subr.mxu0 0.0
        %1145 = vmatpush1.msra.mxu0 0.0
        %1146 = vmatprep.mubr.f32.mxu0 0.0
        %1147 = vmatmul.mubr.f32.gmra.mrb[0].mxu0 %v1077
        %v1148 = vpop.f32.mrb[0].mxu0
        %v1149 = vadd.f32 %v1068, %v1148
        %v1150 = vpop.f32.mrb[0].mxu0
        %1151 = vmatprep.mubr.f32.mxu0 0.0
        %1152 = vmatmul.mubr.f32.gmra.mrb[0].mxu0 %v1080
        %v1153 = vpop.f32.mrb[0].mxu0
        %v1154 = vadd.f32 %v1073, %v1153
        %v1155 = vpop.f32.mrb[0].mxu0
        %1156 = vdwg.mxu0
        %v1157 = vld [vmem:[%s1 + $0x98] sm:$0xff]
        %v1158 = vld [vmem:[%s1 + $0xa0] sm:$0xff]
        %v1160 = vsel %vm300, %v989, 0
        %v1163 = vsel %vm300, %v990, 0
        %1165 = vmatprep.subr.mxu0 0.0
        %1166 = vmatpush1.msra.mxu0 %v1157
        %1167 = vmatprep.subr.mxu0 0.0
        %1168 = vmatpush1.msra.mxu0 %v1158
        %1169 = vmatprep.subr.mxu0 0.0
        %1170 = vmatpush1.msra.mxu0 0.0
        %1171 = vmatprep.subr.mxu0 0.0
        %1172 = vmatpush1.msra.mxu0 0.0
        %1173 = vmatprep.subr.mxu0 0.0
        %1174 = vmatpush1.msra.mxu0 0.0
        %1175 = vmatprep.subr.mxu0 0.0
        %1176 = vmatpush1.msra.mxu0 0.0
        %1177 = vmatprep.subr.mxu0 0.0
        %1178 = vmatpush1.msra.mxu0 0.0
        %1179 = vmatprep.subr.mxu0 0.0
        %1180 = vmatpush1.msra.mxu0 0.0
        %1181 = vmatprep.subr.mxu0 0.0
        %1182 = vmatpush1.msra.mxu0 0.0
        %1183 = vmatprep.subr.mxu0 0.0
        %1184 = vmatpush1.msra.mxu0 0.0
        %1185 = vmatprep.subr.mxu0 0.0
        %1186 = vmatpush1.msra.mxu0 0.0
        %1187 = vmatprep.subr.mxu0 0.0
        %1188 = vmatpush1.msra.mxu0 0.0
        %1189 = vmatprep.subr.mxu0 0.0
        %1190 = vmatpush1.msra.mxu0 0.0
        %1191 = vmatprep.subr.mxu0 0.0
        %1192 = vmatpush1.msra.mxu0 0.0
        %1193 = vmatprep.subr.mxu0 0.0
        %1194 = vmatpush1.msra.mxu0 0.0
        %1195 = vmatprep.subr.mxu0 0.0
        %1196 = vmatpush1.msra.mxu0 0.0
        %1197 = vmatprep.subr.mxu0 0.0
        %1198 = vmatpush1.msra.mxu0 0.0
        %1199 = vmatprep.subr.mxu0 0.0
        %1200 = vmatpush1.msra.mxu0 0.0
        %1201 = vmatprep.subr.mxu0 0.0
        %1202 = vmatpush1.msra.mxu0 0.0
        %1203 = vmatprep.subr.mxu0 0.0
        %1204 = vmatpush1.msra.mxu0 0.0
        %1205 = vmatprep.subr.mxu0 0.0
        %1206 = vmatpush1.msra.mxu0 0.0
        %1207 = vmatprep.subr.mxu0 0.0
        %1208 = vmatpush1.msra.mxu0 0.0
        %1209 = vmatprep.subr.mxu0 0.0
        %1210 = vmatpush1.msra.mxu0 0.0
        %1211 = vmatprep.subr.mxu0 0.0
        %1212 = vmatpush1.msra.mxu0 0.0
        %1213 = vmatprep.subr.mxu0 0.0
        %1214 = vmatpush1.msra.mxu0 0.0
        %1215 = vmatprep.subr.mxu0 0.0
        %1216 = vmatpush1.msra.mxu0 0.0
        %1217 = vmatprep.subr.mxu0 0.0
        %1218 = vmatpush1.msra.mxu0 0.0
        %1219 = vmatprep.subr.mxu0 0.0
        %1220 = vmatpush1.msra.mxu0 0.0
        %1221 = vmatprep.subr.mxu0 0.0
        %1222 = vmatpush1.msra.mxu0 0.0
        %1223 = vmatprep.subr.mxu0 0.0
        %1224 = vmatpush1.msra.mxu0 0.0
        %1225 = vmatprep.subr.mxu0 0.0
        %1226 = vmatpush1.msra.mxu0 0.0
        %1227 = vmatprep.subr.mxu0 0.0
        %1228 = vmatpush1.msra.mxu0 0.0
        %1229 = vmatprep.mubr.f32.mxu0 0.0
        %1230 = vmatmul.mubr.f32.gmra.mrb[0].mxu0 %v1160
        %v1231 = vpop.f32.mrb[0].mxu0
        %v1232 = vadd.f32 0.0, %v1231
        %v1233 = vpop.f32.mrb[0].mxu0
        %1234 = vmatprep.mubr.f32.mxu0 0.0
        %1235 = vmatmul.mubr.f32.gmra.mrb[0].mxu0 %v1163
        %v1236 = vpop.f32.mrb[0].mxu0
        %v1237 = vadd.f32 0.0, %v1236
        %v1238 = vpop.f32.mrb[0].mxu0
        %1239 = vdwg.mxu0
        %v1240 = vadd.f32 %v1149, %v1232
        %v1241 = vadd.f32 %v1154, %v1237
        %v1242 = vld [vmem:[%s1 + $0x111] sm:$0x1]
        %v1243 = vlaneseq
        %v1244 = vshrl.u32 %v1243, 7
        %v1245 = vsub.s32 0, %v1244
        %v1246 = vrot.slane %v1242, %v1245
        %v1247 = vadd.f32 %v1240, %v1246
        %v1248 = vadd.f32 %v1241, %v1246
        %v1249 = vsel %vm300, %v1247, 0.0
        %v1250 = vsel %vm300, %v1248, 0.0
        %v1251 = vadd.f32 %v1249, %v1250
        %v1252 = vrot.slane %v1251, 4
        %v1253 = vadd.f32 %v1251, %v1252
        %v1254 = vrot.slane %v1253, 2
        %v1255 = vadd.f32 %v1253, %v1254
        %v1256 = vrot.slane %v1255, 1
        %v1257 = vadd.f32 %v1255, %v1256
        %v1258 = vmul.f32 %v1257, %v310
        %v1259 = vsub.f32 %v1247, %v1258
        %v1260 = vsub.f32 %v1248, %v1258
        %v1261 = vmul.f32 %v1259, %v1259
        %v1262 = vmul.f32 %v1260, %v1260
        %v1263 = vsel %vm300, %v1261, 0.0
        %v1264 = vsel %vm300, %v1262, 0.0
        %v1265 = vadd.f32 %v1263, %v1264
        %v1266 = vrot.slane %v1265, 4
        %v1267 = vadd.f32 %v1265, %v1266
        %v1268 = vrot.slane %v1267, 2
        %v1269 = vadd.f32 %v1267, %v1268
        %v1270 = vrot.slane %v1269, 1
        %v1271 = vadd.f32 %v1269, %v1270
        %v1272 = vmul.f32 %v1271, %v310
        %v1273 = vld [vmem:[%s1 + $0x112] sm:$0x1]
        %v1274 = vadd.f32 %v1272, 1e-05
        %v1275 = vrsqrt.pop %v1274
        %v1276 = vmul.f32 %v1273, %v1275
        %v1277 = vld [vmem:[%s1 + $0x113] sm:$0x1]
        %v1278 = vmul.f32 %v1258, %v1276
        %v1279 = vsub.f32 %v1277, %v1278
        %v1280 = vlaneseq
        %v1281 = vshrl.u32 %v1280, 7
        %v1282 = vsub.s32 0, %v1281
        %v1283 = vrot.slane %v1276, %v1282
        %v1284 = vmul.f32 %v1247, %v1283
        %v1285 = vmul.f32 %v1248, %v1283
        %v1286 = vlaneseq
        %v1287 = vshrl.u32 %v1286, 7
        %v1288 = vsub.s32 0, %v1287
        %v1289 = vrot.slane %v1279, %v1288
        %v1290 = vadd.f32 %v1284, %v1289
        %v1291 = vadd.f32 %v1285, %v1289
        %v1292 = vmax.f32 %v1290, 0.0
        %v1293 = vmax.f32 %v1291, 0.0
        %v1294 = vrot.slane %v1292, 7
        %v1295 = vrot.slane %v1293, 7
        %v1296 = vsel %vm349, %v1294, %v1295
        %v1297 = vsel %vm349, %v1295, %v1294
        %v1298 = vmul.f32 %v1297, %v200
        %v1299 = vmul.f32 %v1296, %v201
        %v1300 = vrot.slane %v1292, 1
        %v1301 = vrot.slane %v1293, 1
        %v1302 = vsel %vm356, %v1300, %v1301
        %v1303 = vsel %vm356, %v1301, %v1300
        %v1304 = vmul.f32 %v1302, %v206
        %v1305 = vmul.f32 %v1303, %v207
        %v1306 = vld [vmem:[%s1 + $0xa8] sm:$0xff]
        %v1307 = vld [vmem:[%s1 + $0xb0] sm:$0xff]
        %v1308 = vld [vmem:[%s1 + $0xb8] sm:$0xff]
        %v1309 = vld [vmem:[%s1 + $0xc0] sm:$0xff]
        %v1311 = vsel %vm300, %v1292, 0
        %v1314 = vsel %vm300, %v1293, 0
        %1316 = vmatprep.subr.mxu0 0.0
        %1317 = vmatpush1.msra.mxu0 %v1308
        %1318 = vmatprep.subr.mxu0 0.0
        %1319 = vmatpush1.msra.mxu0 %v1309
        %1320 = vmatprep.subr.mxu0 0.0
        %1321 = vmatpush1.msra.mxu0 0.0
        %1322 = vmatprep.subr.mxu0 0.0
        %1323 = vmatpush1.msra.mxu0 0.0
        %1324 = vmatprep.subr.mxu0 0.0
        %1325 = vmatpush1.msra.mxu0 0.0
        %1326 = vmatprep.subr.mxu0 0.0
        %1327 = vmatpush1.msra.mxu0 0.0
        %1328 = vmatprep.subr.mxu0 0.0
        %1329 = vmatpush1.msra.mxu0 0.0
        %1330 = vmatprep.subr.mxu0 0.0
        %1331 = vmatpush1.msra.mxu0 0.0
        %1332 = vmatprep.subr.mxu0 0.0
        %1333 = vmatpush1.msra.mxu0 0.0
        %1334 = vmatprep.subr.mxu0 0.0
        %1335 = vmatpush1.msra.mxu0 0.0
        %1336 = vmatprep.subr.mxu0 0.0
        %1337 = vmatpush1.msra.mxu0 0.0
        %1338 = vmatprep.subr.mxu0 0.0
        %1339 = vmatpush1.msra.mxu0 0.0
        %1340 = vmatprep.subr.mxu0 0.0
        %1341 = vmatpush1.msra.mxu0 0.0
        %1342 = vmatprep.subr.mxu0 0.0
        %1343 = vmatpush1.msra.mxu0 0.0
        %1344 = vmatprep.subr.mxu0 0.0
        %1345 = vmatpush1.msra.mxu0 0.0
        %1346 = vmatprep.subr.mxu0 0.0
        %1347 = vmatpush1.msra.mxu0 0.0
        %1348 = vmatprep.subr.mxu0 0.0
        %1349 = vmatpush1.msra.mxu0 0.0
        %1350 = vmatprep.subr.mxu0 0.0
        %1351 = vmatpush1.msra.mxu0 0.0
        %1352 = vmatprep.subr.mxu0 0.0
        %1353 = vmatpush1.msra.mxu0 0.0
        %1354 = vmatprep.subr.mxu0 0.0
        %1355 = vmatpush1.msra.mxu0 0.0
        %1356 = vmatprep.subr.mxu0 0.0
        %1357 = vmatpush1.msra.mxu0 0.0
        %1358 = vmatprep.subr.mxu0 0.0
        %1359 = vmatpush1.msra.mxu0 0.0
        %1360 = vmatprep.subr.mxu0 0.0
        %1361 = vmatpush1.msra.mxu0 0.0
        %1362 = vmatprep.subr.mxu0 0.0
        %1363 = vmatpush1.msra.mxu0 0.0
        %1364 = vmatprep.subr.mxu0 0.0
        %1365 = vmatpush1.msra.mxu0 0.0
        %1366 = vmatprep.subr.mxu0 0.0
        %1367 = vmatpush1.msra.mxu0 0.0
        %1368 = vmatprep.subr.mxu0 0.0
        %1369 = vmatpush1.msra.mxu0 0.0
        %1370 = vmatprep.subr.mxu0 0.0
        %1371 = vmatpush1.msra.mxu0 0.0
        %1372 = vmatprep.subr.mxu0 0.0
        %1373 = vmatpush1.msra.mxu0 0.0
        %1374 = vmatprep.subr.mxu0 0.0
        %1375 = vmatpush1.msra.mxu0 0.0
        %1376 = vmatprep.subr.mxu0 0.0
        %1377 = vmatpush1.msra.mxu0 0.0
        %1378 = vmatprep.subr.mxu0 0.0
        %1379 = vmatpush1.msra.mxu0 0.0
        %1380 = vmatprep.mubr.f32.mxu0 0.0
        %1381 = vmatmul.mubr.f32.gmra.mrb[0].mxu0 %v1311
        %v1382 = vpop.f32.mrb[0].mxu0
        %v1383 = vadd.f32 0.0, %v1382
        %v1384 = vpop.f32.mrb[0].mxu0
        %1385 = vmatprep.mubr.f32.mxu0 0.0
        %1386 = vmatmul.mubr.f32.gmra.mrb[0].mxu0 %v1314
        %v1387 = vpop.f32.mrb[0].mxu0
        %v1388 = vadd.f32 0.0, %v1387
        %v1389 = vpop.f32.mrb[0].mxu0
        %1390 = vdwg.mxu0
        %v1392 = vsel %vm300, %v1298, 0
        %v1395 = vsel %vm300, %v1299, 0
        %1397 = vmatprep.subr.mxu0 0.0
        %1398 = vmatpush1.msra.mxu0 %v1306
        %1399 = vmatprep.subr.mxu0 0.0
        %1400 = vmatpush1.msra.mxu0 %v1307
        %1401 = vmatprep.subr.mxu0 0.0
        %1402 = vmatpush1.msra.mxu0 0.0
        %1403 = vmatprep.subr.mxu0 0.0
        %1404 = vmatpush1.msra.mxu0 0.0
        %1405 = vmatprep.subr.mxu0 0.0
        %1406 = vmatpush1.msra.mxu0 0.0
        %1407 = vmatprep.subr.mxu0 0.0
        %1408 = vmatpush1.msra.mxu0 0.0
        %1409 = vmatprep.subr.mxu0 0.0
        %1410 = vmatpush1.msra.mxu0 0.0
        %1411 = vmatprep.subr.mxu0 0.0
        %1412 = vmatpush1.msra.mxu0 0.0
        %1413 = vmatprep.subr.mxu0 0.0
        %1414 = vmatpush1.msra.mxu0 0.0
        %1415 = vmatprep.subr.mxu0 0.0
        %1416 = vmatpush1.msra.mxu0 0.0
        %1417 = vmatprep.subr.mxu0 0.0
        %1418 = vmatpush1.msra.mxu0 0.0
        %1419 = vmatprep.subr.mxu0 0.0
        %1420 = vmatpush1.msra.mxu0 0.0
        %1421 = vmatprep.subr.mxu0 0.0
        %1422 = vmatpush1.msra.mxu0 0.0
        %1423 = vmatprep.subr.mxu0 0.0
        %1424 = vmatpush1.msra.mxu0 0.0
        %1425 = vmatprep.subr.mxu0 0.0
        %1426 = vmatpush1.msra.mxu0 0.0
        %1427 = vmatprep.subr.mxu0 0.0
        %1428 = vmatpush1.msra.mxu0 0.0
        %1429 = vmatprep.subr.mxu0 0.0
        %1430 = vmatpush1.msra.mxu0 0.0
        %1431 = vmatprep.subr.mxu0 0.0
        %1432 = vmatpush1.msra.mxu0 0.0
        %1433 = vmatprep.subr.mxu0 0.0
        %1434 = vmatpush1.msra.mxu0 0.0
        %1435 = vmatprep.subr.mxu0 0.0
        %1436 = vmatpush1.msra.mxu0 0.0
        %1437 = vmatprep.subr.mxu0 0.0
        %1438 = vmatpush1.msra.mxu0 0.0
        %1439 = vmatprep.subr.mxu0 0.0
        %1440 = vmatpush1.msra.mxu0 0.0
        %1441 = vmatprep.subr.mxu0 0.0
        %1442 = vmatpush1.msra.mxu0 0.0
        %1443 = vmatprep.subr.mxu0 0.0
        %1444 = vmatpush1.msra.mxu0 0.0
        %1445 = vmatprep.subr.mxu0 0.0
        %1446 = vmatpush1.msra.mxu0 0.0
        %1447 = vmatprep.subr.mxu0 0.0
        %1448 = vmatpush1.msra.mxu0 0.0
        %1449 = vmatprep.subr.mxu0 0.0
        %1450 = vmatpush1.msra.mxu0 0.0
        %1451 = vmatprep.subr.mxu0 0.0
        %1452 = vmatpush1.msra.mxu0 0.0
        %1453 = vmatprep.subr.mxu0 0.0
        %1454 = vmatpush1.msra.mxu0 0.0
        %1455 = vmatprep.subr.mxu0 0.0
        %1456 = vmatpush1.msra.mxu0 0.0
        %1457 = vmatprep.subr.mxu0 0.0
        %1458 = vmatpush1.msra.mxu0 0.0
        %1459 = vmatprep.subr.mxu0 0.0
        %1460 = vmatpush1.msra.mxu0 0.0
        %1461 = vmatprep.mubr.f32.mxu0 0.0
        %1462 = vmatmul.mubr.f32.gmra.mrb[0].mxu0 %v1392
        %v1463 = vpop.f32.mrb[0].mxu0
        %v1464 = vadd.f32 %v1383, %v1463
        %v1465 = vpop.f32.mrb[0].mxu0
        %1466 = vmatprep.mubr.f32.mxu0 0.0
        %1467 = vmatmul.mubr.f32.gmra.mrb[0].mxu0 %v1395
        %v1468 = vpop.f32.mrb[0].mxu0
        %v1469 = vadd.f32 %v1388, %v1468
        %v1470 = vpop.f32.mrb[0].mxu0
        %1471 = vdwg.mxu0
        %v1472 = vld [vmem:[%s1 + $0xc8] sm:$0xff]
        %v1473 = vld [vmem:[%s1 + $0xd0] sm:$0xff]
        %v1475 = vsel %vm300, %v1304, 0
        %v1478 = vsel %vm300, %v1305, 0
        %1480 = vmatprep.subr.mxu0 0.0
        %1481 = vmatpush1.msra.mxu0 %v1472
        %1482 = vmatprep.subr.mxu0 0.0
        %1483 = vmatpush1.msra.mxu0 %v1473
        %1484 = vmatprep.subr.mxu0 0.0
        %1485 = vmatpush1.msra.mxu0 0.0
        %1486 = vmatprep.subr.mxu0 0.0
        %1487 = vmatpush1.msra.mxu0 0.0
        %1488 = vmatprep.subr.mxu0 0.0
        %1489 = vmatpush1.msra.mxu0 0.0
        %1490 = vmatprep.subr.mxu0 0.0
        %1491 = vmatpush1.msra.mxu0 0.0
        %1492 = vmatprep.subr.mxu0 0.0
        %1493 = vmatpush1.msra.mxu0 0.0
        %1494 = vmatprep.subr.mxu0 0.0
        %1495 = vmatpush1.msra.mxu0 0.0
        %1496 = vmatprep.subr.mxu0 0.0
        %1497 = vmatpush1.msra.mxu0 0.0
        %1498 = vmatprep.subr.mxu0 0.0
        %1499 = vmatpush1.msra.mxu0 0.0
        %1500 = vmatprep.subr.mxu0 0.0
        %1501 = vmatpush1.msra.mxu0 0.0
        %1502 = vmatprep.subr.mxu0 0.0
        %1503 = vmatpush1.msra.mxu0 0.0
        %1504 = vmatprep.subr.mxu0 0.0
        %1505 = vmatpush1.msra.mxu0 0.0
        %1506 = vmatprep.subr.mxu0 0.0
        %1507 = vmatpush1.msra.mxu0 0.0
        %1508 = vmatprep.subr.mxu0 0.0
        %1509 = vmatpush1.msra.mxu0 0.0
        %1510 = vmatprep.subr.mxu0 0.0
        %1511 = vmatpush1.msra.mxu0 0.0
        %1512 = vmatprep.subr.mxu0 0.0
        %1513 = vmatpush1.msra.mxu0 0.0
        %1514 = vmatprep.subr.mxu0 0.0
        %1515 = vmatpush1.msra.mxu0 0.0
        %1516 = vmatprep.subr.mxu0 0.0
        %1517 = vmatpush1.msra.mxu0 0.0
        %1518 = vmatprep.subr.mxu0 0.0
        %1519 = vmatpush1.msra.mxu0 0.0
        %1520 = vmatprep.subr.mxu0 0.0
        %1521 = vmatpush1.msra.mxu0 0.0
        %1522 = vmatprep.subr.mxu0 0.0
        %1523 = vmatpush1.msra.mxu0 0.0
        %1524 = vmatprep.subr.mxu0 0.0
        %1525 = vmatpush1.msra.mxu0 0.0
        %1526 = vmatprep.subr.mxu0 0.0
        %1527 = vmatpush1.msra.mxu0 0.0
        %1528 = vmatprep.subr.mxu0 0.0
        %1529 = vmatpush1.msra.mxu0 0.0
        %1530 = vmatprep.subr.mxu0 0.0
        %1531 = vmatpush1.msra.mxu0 0.0
        %1532 = vmatprep.subr.mxu0 0.0
        %1533 = vmatpush1.msra.mxu0 0.0
        %1534 = vmatprep.subr.mxu0 0.0
        %1535 = vmatpush1.msra.mxu0 0.0
        %1536 = vmatprep.subr.mxu0 0.0
        %1537 = vmatpush1.msra.mxu0 0.0
        %1538 = vmatprep.subr.mxu0 0.0
        %1539 = vmatpush1.msra.mxu0 0.0
        %1540 = vmatprep.subr.mxu0 0.0
        %1541 = vmatpush1.msra.mxu0 0.0
        %1542 = vmatprep.subr.mxu0 0.0
        %1543 = vmatpush1.msra.mxu0 0.0
        %1544 = vmatprep.mubr.f32.mxu0 0.0
        %1545 = vmatmul.mubr.f32.gmra.mrb[0].mxu0 %v1475
        %v1546 = vpop.f32.mrb[0].mxu0
        %v1547 = vadd.f32 0.0, %v1546
        %v1548 = vpop.f32.mrb[0].mxu0
        %1549 = vmatprep.mubr.f32.mxu0 0.0
        %1550 = vmatmul.mubr.f32.gmra.mrb[0].mxu0 %v1478
        %v1551 = vpop.f32.mrb[0].mxu0
        %v1552 = vadd.f32 0.0, %v1551
        %v1553 = vpop.f32.mrb[0].mxu0
        %1554 = vdwg.mxu0
        %v1555 = vadd.f32 %v1464, %v1547
        %v1556 = vadd.f32 %v1469, %v1552
        %v1557 = vld [vmem:[%s1 + $0x114] sm:$0x1]
        %v1558 = vlaneseq
        %v1559 = vshrl.u32 %v1558, 7
        %v1560 = vsub.s32 0, %v1559
        %v1561 = vrot.slane %v1557, %v1560
        %v1562 = vadd.f32 %v1555, %v1561
        %v1563 = vadd.f32 %v1556, %v1561
        %v1564 = vsel %vm300, %v1562, 0.0
        %v1565 = vsel %vm300, %v1563, 0.0
        %v1566 = vadd.f32 %v1564, %v1565
        %v1567 = vrot.slane %v1566, 4
        %v1568 = vadd.f32 %v1566, %v1567
        %v1569 = vrot.slane %v1568, 2
        %v1570 = vadd.f32 %v1568, %v1569
        %v1571 = vrot.slane %v1570, 1
        %v1572 = vadd.f32 %v1570, %v1571
        %v1573 = vmul.f32 %v1572, %v310
        %v1574 = vsub.f32 %v1562, %v1573
        %v1575 = vsub.f32 %v1563, %v1573
        %v1576 = vmul.f32 %v1574, %v1574
        %v1577 = vmul.f32 %v1575, %v1575
        %v1578 = vsel %vm300, %v1576, 0.0
        %v1579 = vsel %vm300, %v1577, 0.0
        %v1580 = vadd.f32 %v1578, %v1579
        %v1581 = vrot.slane %v1580, 4
        %v1582 = vadd.f32 %v1580, %v1581
        %v1583 = vrot.slane %v1582, 2
        %v1584 = vadd.f32 %v1582, %v1583
        %v1585 = vrot.slane %v1584, 1
        %v1586 = vadd.f32 %v1584, %v1585
        %v1587 = vmul.f32 %v1586, %v310
        %v1588 = vld [vmem:[%s1 + $0x115] sm:$0x1]
        %v1589 = vadd.f32 %v1587, 1e-05
        %v1590 = vrsqrt.pop %v1589
        %v1591 = vmul.f32 %v1588, %v1590
        %v1592 = vld [vmem:[%s1 + $0x116] sm:$0x1]
        %v1593 = vmul.f32 %v1573, %v1591
        %v1594 = vsub.f32 %v1592, %v1593
        %v1595 = vlaneseq
        %v1596 = vshrl.u32 %v1595, 7
        %v1597 = vsub.s32 0, %v1596
        %v1598 = vrot.slane %v1591, %v1597
        %v1599 = vmul.f32 %v1562, %v1598
        %v1600 = vmul.f32 %v1563, %v1598
        %v1601 = vlaneseq
        %v1602 = vshrl.u32 %v1601, 7
        %v1603 = vsub.s32 0, %v1602
        %v1604 = vrot.slane %v1594, %v1603
        %v1605 = vadd.f32 %v1599, %v1604
        %v1606 = vadd.f32 %v1600, %v1604
        %v1607 = vadd.f32 %v1605, %v977
        %v1608 = vadd.f32 %v1606, %v978
        %v1609 = vld [vmem:[%s2] sm:$0xff]
        %v1610 = vld [vmem:[%s2 + $0x8] sm:$0xff]
        %v1611 = vld [vmem:[%s2 + $0x10] sm:$0xff]
        %v1613 = vsel %vm300, %v1609, 0
        %v1616 = vsel %vm300, %v1610, 0
        %v1619 = vsel %vm300, %v1611, 0
        %1621 = vmatprep.subr.mxu0 0.0
        %1622 = vmatpush1.msra.mxu0 %v1607
        %1623 = vmatprep.subr.mxu0 0.0
        %1624 = vmatpush1.msra.mxu0 %v1608
        %1625 = vmatprep.subr.mxu0 0.0
        %1626 = vmatpush1.msra.mxu0 0.0
        %1627 = vmatprep.subr.mxu0 0.0
        %1628 = vmatpush1.msra.mxu0 0.0
        %1629 = vmatprep.subr.mxu0 0.0
        %1630 = vmatpush1.msra.mxu0 0.0
        %1631 = vmatprep.subr.mxu0 0.0
        %1632 = vmatpush1.msra.mxu0 0.0
        %1633 = vmatprep.subr.mxu0 0.0
        %1634 = vmatpush1.msra.mxu0 0.0
        %1635 = vmatprep.subr.mxu0 0.0
        %1636 = vmatpush1.msra.mxu0 0.0
        %1637 = vmatprep.subr.mxu0 0.0
        %1638 = vmatpush1.msra.mxu0 0.0
        %1639 = vmatprep.subr.mxu0 0.0
        %1640 = vmatpush1.msra.mxu0 0.0
        %1641 = vmatprep.subr.mxu0 0.0
        %1642 = vmatpush1.msra.mxu0 0.0
        %1643 = vmatprep.subr.mxu0 0.0
        %1644 = vmatpush1.msra.mxu0 0.0
        %1645 = vmatprep.subr.mxu0 0.0
        %1646 = vmatpush1.msra.mxu0 0.0
        %1647 = vmatprep.subr.mxu0 0.0
        %1648 = vmatpush1.msra.mxu0 0.0
        %1649 = vmatprep.subr.mxu0 0.0
        %1650 = vmatpush1.msra.mxu0 0.0
        %1651 = vmatprep.subr.mxu0 0.0
        %1652 = vmatpush1.msra.mxu0 0.0
        %1653 = vmatprep.subr.mxu0 0.0
        %1654 = vmatpush1.msra.mxu0 0.0
        %1655 = vmatprep.subr.mxu0 0.0
        %1656 = vmatpush1.msra.mxu0 0.0
        %1657 = vmatprep.subr.mxu0 0.0
        %1658 = vmatpush1.msra.mxu0 0.0
        %1659 = vmatprep.subr.mxu0 0.0
        %1660 = vmatpush1.msra.mxu0 0.0
        %1661 = vmatprep.subr.mxu0 0.0
        %1662 = vmatpush1.msra.mxu0 0.0
        %1663 = vmatprep.subr.mxu0 0.0
        %1664 = vmatpush1.msra.mxu0 0.0
        %1665 = vmatprep.subr.mxu0 0.0
        %1666 = vmatpush1.msra.mxu0 0.0
        %1667 = vmatprep.subr.mxu0 0.0
        %1668 = vmatpush1.msra.mxu0 0.0
        %1669 = vmatprep.subr.mxu0 0.0
        %1670 = vmatpush1.msra.mxu0 0.0
        %1671 = vmatprep.subr.mxu0 0.0
        %1672 = vmatpush1.msra.mxu0 0.0
        %1673 = vmatprep.subr.mxu0 0.0
        %1674 = vmatpush1.msra.mxu0 0.0
        %1675 = vmatprep.subr.mxu0 0.0
        %1676 = vmatpush1.msra.mxu0 0.0
        %1677 = vmatprep.subr.mxu0 0.0
        %1678 = vmatpush1.msra.mxu0 0.0
        %1679 = vmatprep.subr.mxu0 0.0
        %1680 = vmatpush1.msra.mxu0 0.0
        %1681 = vmatprep.subr.mxu0 0.0
        %1682 = vmatpush1.msra.mxu0 0.0
        %1683 = vmatprep.subr.mxu0 0.0
        %1684 = vmatpush1.msra.mxu0 0.0
        %1685 = vmatprep.mubr.f32.mxu0 0.0
        %1686 = vmatmul.mubr.f32.gmra.mrb[0].mxu0 %v1613
        %v1687 = vpop.f32.mrb[0].mxu0
        %v1688 = vadd.f32 0.0, %v1687
        %v1689 = vpop.f32.mrb[0].mxu0
        %1690 = vmatprep.mubr.f32.mxu0 0.0
        %1691 = vmatmul.mubr.f32.gmra.mrb[0].mxu0 %v1616
        %v1692 = vpop.f32.mrb[0].mxu0
        %v1693 = vadd.f32 0.0, %v1692
        %v1694 = vpop.f32.mrb[0].mxu0
        %1695 = vmatprep.mubr.f32.mxu0 0.0
        %1696 = vmatmul.mubr.f32.gmra.mrb[0].mxu0 %v1619
        %v1697 = vpop.f32.mrb[0].mxu0
        %v1698 = vadd.f32 0.0, %v1697
        %v1699 = vpop.f32.mrb[0].mxu0
        %1700 = vdwg.mxu0
        %v1701 = vld [vmem:[%s1 + $0xd8] sm:$0xff]
        %v1702 = vld [vmem:[%s1 + $0xe0] sm:$0xff]
        %v1703 = vld [vmem:[%s1 + $0xe8] sm:$0xff]
        %v1704 = vld [vmem:[%s1 + $0xf0] sm:$0xff]
        %v1706 = vsel %vm300, %v1693, 0
        %1708 = vmatprep.subr.mxu0 0.0
        %1709 = vmatpush1.msra.mxu0 %v1703
        %1710 = vmatprep.subr.mxu0 0.0
        %1711 = vmatpush1.msra.mxu0 %v1704
        %1712 = vmatprep.subr.mxu0 0.0
        %1713 = vmatpush1.msra.mxu0 0.0
        %1714 = vmatprep.subr.mxu0 0.0
        %1715 = vmatpush1.msra.mxu0 0.0
        %1716 = vmatprep.subr.mxu0 0.0
        %1717 = vmatpush1.msra.mxu0 0.0
        %1718 = vmatprep.subr.mxu0 0.0
        %1719 = vmatpush1.msra.mxu0 0.0
        %1720 = vmatprep.subr.mxu0 0.0
        %1721 = vmatpush1.msra.mxu0 0.0
        %1722 = vmatprep.subr.mxu0 0.0
        %1723 = vmatpush1.msra.mxu0 0.0
        %1724 = vmatprep.subr.mxu0 0.0
        %1725 = vmatpush1.msra.mxu0 0.0
        %1726 = vmatprep.subr.mxu0 0.0
        %1727 = vmatpush1.msra.mxu0 0.0
        %1728 = vmatprep.subr.mxu0 0.0
        %1729 = vmatpush1.msra.mxu0 0.0
        %1730 = vmatprep.subr.mxu0 0.0
        %1731 = vmatpush1.msra.mxu0 0.0
        %1732 = vmatprep.subr.mxu0 0.0
        %1733 = vmatpush1.msra.mxu0 0.0
        %1734 = vmatprep.subr.mxu0 0.0
        %1735 = vmatpush1.msra.mxu0 0.0
        %1736 = vmatprep.subr.mxu0 0.0
        %1737 = vmatpush1.msra.mxu0 0.0
        %1738 = vmatprep.subr.mxu0 0.0
        %1739 = vmatpush1.msra.mxu0 0.0
        %1740 = vmatprep.subr.mxu0 0.0
        %1741 = vmatpush1.msra.mxu0 0.0
        %1742 = vmatprep.subr.mxu0 0.0
        %1743 = vmatpush1.msra.mxu0 0.0
        %1744 = vmatprep.subr.mxu0 0.0
        %1745 = vmatpush1.msra.mxu0 0.0
        %1746 = vmatprep.subr.mxu0 0.0
        %1747 = vmatpush1.msra.mxu0 0.0
        %1748 = vmatprep.subr.mxu0 0.0
        %1749 = vmatpush1.msra.mxu0 0.0
        %1750 = vmatprep.subr.mxu0 0.0
        %1751 = vmatpush1.msra.mxu0 0.0
        %1752 = vmatprep.subr.mxu0 0.0
        %1753 = vmatpush1.msra.mxu0 0.0
        %1754 = vmatprep.subr.mxu0 0.0
        %1755 = vmatpush1.msra.mxu0 0.0
        %1756 = vmatprep.subr.mxu0 0.0
        %1757 = vmatpush1.msra.mxu0 0.0
        %1758 = vmatprep.subr.mxu0 0.0
        %1759 = vmatpush1.msra.mxu0 0.0
        %1760 = vmatprep.subr.mxu0 0.0
        %1761 = vmatpush1.msra.mxu0 0.0
        %1762 = vmatprep.subr.mxu0 0.0
        %1763 = vmatpush1.msra.mxu0 0.0
        %1764 = vmatprep.subr.mxu0 0.0
        %1765 = vmatpush1.msra.mxu0 0.0
        %1766 = vmatprep.subr.mxu0 0.0
        %1767 = vmatpush1.msra.mxu0 0.0
        %1768 = vmatprep.subr.mxu0 0.0
        %1769 = vmatpush1.msra.mxu0 0.0
        %1770 = vmatprep.subr.mxu0 0.0
        %1771 = vmatpush1.msra.mxu0 0.0
        %1772 = vmatprep.mubr.f32.mxu0 0.0
        %1773 = vmatmul.mubr.f32.gmra.mrb[0].mxu0 %v1706
        %v1774 = vpop.f32.mrb[0].mxu0
        %v1775 = vadd.f32 0.0, %v1774
        %v1776 = vpop.f32.mrb[0].mxu0
        %1777 = vdwg.mxu0
        %v1779 = vsel %vm300, %v1688, 0
        %1781 = vmatprep.subr.mxu0 0.0
        %1782 = vmatpush1.msra.mxu0 %v1701
        %1783 = vmatprep.subr.mxu0 0.0
        %1784 = vmatpush1.msra.mxu0 %v1702
        %1785 = vmatprep.subr.mxu0 0.0
        %1786 = vmatpush1.msra.mxu0 0.0
        %1787 = vmatprep.subr.mxu0 0.0
        %1788 = vmatpush1.msra.mxu0 0.0
        %1789 = vmatprep.subr.mxu0 0.0
        %1790 = vmatpush1.msra.mxu0 0.0
        %1791 = vmatprep.subr.mxu0 0.0
        %1792 = vmatpush1.msra.mxu0 0.0
        %1793 = vmatprep.subr.mxu0 0.0
        %1794 = vmatpush1.msra.mxu0 0.0
        %1795 = vmatprep.subr.mxu0 0.0
        %1796 = vmatpush1.msra.mxu0 0.0
        %1797 = vmatprep.subr.mxu0 0.0
        %1798 = vmatpush1.msra.mxu0 0.0
        %1799 = vmatprep.subr.mxu0 0.0
        %1800 = vmatpush1.msra.mxu0 0.0
        %1801 = vmatprep.subr.mxu0 0.0
        %1802 = vmatpush1.msra.mxu0 0.0
        %1803 = vmatprep.subr.mxu0 0.0
        %1804 = vmatpush1.msra.mxu0 0.0
        %1805 = vmatprep.subr.mxu0 0.0
        %1806 = vmatpush1.msra.mxu0 0.0
        %1807 = vmatprep.subr.mxu0 0.0
        %1808 = vmatpush1.msra.mxu0 0.0
        %1809 = vmatprep.subr.mxu0 0.0
        %1810 = vmatpush1.msra.mxu0 0.0
        %1811 = vmatprep.subr.mxu0 0.0
        %1812 = vmatpush1.msra.mxu0 0.0
        %1813 = vmatprep.subr.mxu0 0.0
        %1814 = vmatpush1.msra.mxu0 0.0
        %1815 = vmatprep.subr.mxu0 0.0
        %1816 = vmatpush1.msra.mxu0 0.0
        %1817 = vmatprep.subr.mxu0 0.0
        %1818 = vmatpush1.msra.mxu0 0.0
        %1819 = vmatprep.subr.mxu0 0.0
        %1820 = vmatpush1.msra.mxu0 0.0
        %1821 = vmatprep.subr.mxu0 0.0
        %1822 = vmatpush1.msra.mxu0 0.0
        %1823 = vmatprep.subr.mxu0 0.0
        %1824 = vmatpush1.msra.mxu0 0.0
        %1825 = vmatprep.subr.mxu0 0.0
        %1826 = vmatpush1.msra.mxu0 0.0
        %1827 = vmatprep.subr.mxu0 0.0
        %1828 = vmatpush1.msra.mxu0 0.0
        %1829 = vmatprep.subr.mxu0 0.0
        %1830 = vmatpush1.msra.mxu0 0.0
        %1831 = vmatprep.subr.mxu0 0.0
        %1832 = vmatpush1.msra.mxu0 0.0
        %1833 = vmatprep.subr.mxu0 0.0
        %1834 = vmatpush1.msra.mxu0 0.0
        %1835 = vmatprep.subr.mxu0 0.0
        %1836 = vmatpush1.msra.mxu0 0.0
        %1837 = vmatprep.subr.mxu0 0.0
        %1838 = vmatpush1.msra.mxu0 0.0
        %1839 = vmatprep.subr.mxu0 0.0
        %1840 = vmatpush1.msra.mxu0 0.0
        %1841 = vmatprep.subr.mxu0 0.0
        %1842 = vmatpush1.msra.mxu0 0.0
        %1843 = vmatprep.subr.mxu0 0.0
        %1844 = vmatpush1.msra.mxu0 0.0
        %1845 = vmatprep.mubr.f32.mxu0 0.0
        %1846 = vmatmul.mubr.f32.gmra.mrb[0].mxu0 %v1779
        %v1847 = vpop.f32.mrb[0].mxu0
        %v1848 = vadd.f32 %v1775, %v1847
        %v1849 = vpop.f32.mrb[0].mxu0
        %1850 = vdwg.mxu0
        %v1851 = vld [vmem:[%s1 + $0xf8] sm:$0xff]
        %v1852 = vld [vmem:[%s1 + $0x100] sm:$0xff]
        %v1854 = vsel %vm300, %v1698, 0
        %1856 = vmatprep.subr.mxu0 0.0
        %1857 = vmatpush1.msra.mxu0 %v1851
        %1858 = vmatprep.subr.mxu0 0.0
        %1859 = vmatpush1.msra.mxu0 %v1852
        %1860 = vmatprep.subr.mxu0 0.0
        %1861 = vmatpush1.msra.mxu0 0.0
        %1862 = vmatprep.subr.mxu0 0.0
        %1863 = vmatpush1.msra.mxu0 0.0
        %1864 = vmatprep.subr.mxu0 0.0
        %1865 = vmatpush1.msra.mxu0 0.0
        %1866 = vmatprep.subr.mxu0 0.0
        %1867 = vmatpush1.msra.mxu0 0.0
        %1868 = vmatprep.subr.mxu0 0.0
        %1869 = vmatpush1.msra.mxu0 0.0
        %1870 = vmatprep.subr.mxu0 0.0
        %1871 = vmatpush1.msra.mxu0 0.0
        %1872 = vmatprep.subr.mxu0 0.0
        %1873 = vmatpush1.msra.mxu0 0.0
        %1874 = vmatprep.subr.mxu0 0.0
        %1875 = vmatpush1.msra.mxu0 0.0
        %1876 = vmatprep.subr.mxu0 0.0
        %1877 = vmatpush1.msra.mxu0 0.0
        %1878 = vmatprep.subr.mxu0 0.0
        %1879 = vmatpush1.msra.mxu0 0.0
        %1880 = vmatprep.subr.mxu0 0.0
        %1881 = vmatpush1.msra.mxu0 0.0
        %1882 = vmatprep.subr.mxu0 0.0
        %1883 = vmatpush1.msra.mxu0 0.0
        %1884 = vmatprep.subr.mxu0 0.0
        %1885 = vmatpush1.msra.mxu0 0.0
        %1886 = vmatprep.subr.mxu0 0.0
        %1887 = vmatpush1.msra.mxu0 0.0
        %1888 = vmatprep.subr.mxu0 0.0
        %1889 = vmatpush1.msra.mxu0 0.0
        %1890 = vmatprep.subr.mxu0 0.0
        %1891 = vmatpush1.msra.mxu0 0.0
        %1892 = vmatprep.subr.mxu0 0.0
        %1893 = vmatpush1.msra.mxu0 0.0
        %1894 = vmatprep.subr.mxu0 0.0
        %1895 = vmatpush1.msra.mxu0 0.0
        %1896 = vmatprep.subr.mxu0 0.0
        %1897 = vmatpush1.msra.mxu0 0.0
        %1898 = vmatprep.subr.mxu0 0.0
        %1899 = vmatpush1.msra.mxu0 0.0
        %1900 = vmatprep.subr.mxu0 0.0
        %1901 = vmatpush1.msra.mxu0 0.0
        %1902 = vmatprep.subr.mxu0 0.0
        %1903 = vmatpush1.msra.mxu0 0.0
        %1904 = vmatprep.subr.mxu0 0.0
        %1905 = vmatpush1.msra.mxu0 0.0
        %1906 = vmatprep.subr.mxu0 0.0
        %1907 = vmatpush1.msra.mxu0 0.0
        %1908 = vmatprep.subr.mxu0 0.0
        %1909 = vmatpush1.msra.mxu0 0.0
        %1910 = vmatprep.subr.mxu0 0.0
        %1911 = vmatpush1.msra.mxu0 0.0
        %1912 = vmatprep.subr.mxu0 0.0
        %1913 = vmatpush1.msra.mxu0 0.0
        %1914 = vmatprep.subr.mxu0 0.0
        %1915 = vmatpush1.msra.mxu0 0.0
        %1916 = vmatprep.subr.mxu0 0.0
        %1917 = vmatpush1.msra.mxu0 0.0
        %1918 = vmatprep.subr.mxu0 0.0
        %1919 = vmatpush1.msra.mxu0 0.0
        %1920 = vmatprep.mubr.f32.mxu0 0.0
        %1921 = vmatmul.mubr.f32.gmra.mrb[0].mxu0 %v1854
        %v1922 = vpop.f32.mrb[0].mxu0
        %v1923 = vadd.f32 0.0, %v1922
        %v1924 = vpop.f32.mrb[0].mxu0
        %1925 = vdwg.mxu0
        %v1926 = vadd.f32 %v1848, %v1923
        %v1927 = vld [vmem:[%s1 + $0x117] sm:$0x1]
        %v1928 = vlaneseq
        %v1929 = vshrl.u32 %v1928, 7
        %v1930 = vsub.s32 0, %v1929
        %v1931 = vrot.slane %v1927, %v1930
        %v1932 = vadd.f32 %v1926, %v1931
        %vm1933 = vcmask 123904
        %1934 = vst.msk [vmem:[%s163] sm:$0x3] %vm1933, %v1932
        %s1935 = sand.u32 %s93, 1
        %s1936 = scalar_lea.sflag [#allocation3], %s1935
        %s1937 = sand.u32 %s93, 1
        %s1938 = smul.addr %s1937, 2
        %s1939 = scalar_lea.vmem [#allocation2], %s1938
        // Predicated region
        $region33: #{tpu_custom_call.1} parent=31 // pred_check
          %p1940 = pneg %p103
        $region34: #{tpu_custom_call.1} parent=31 // pred_check_branch
          %1942 = sbr.rel (%p1940) target = $region36
        $region35: #{tpu_custom_call.1} parent=31 // pred_region
          %s1944 = ssub.s32 32, 32
          %1945 = vsyncadd %s1936, %s1944
          %s1946 = smul.addr %s17, 32
          %s1947 = scalar_lea.hbm %s3, %s1946
          %s1949 = sshll.u32 %s1939, 4
          %s1950 = int_to_ptr.vmem [resolvable:$true] %s1949
          %1952 = dma.vmem_to_hbm [thread:$0]  %s1950, 32, %s1947, %s1936
        $region36: #{tpu_custom_call.1} parent=31 // pred_fallthru
          _
      $region32: #{tpu_custom_call.1} parent=5 // pred_fallthru
        _
      %p1953 = scmp.le.s32.totalorder 2, %s12
      // Predicated region
      $region37: #{tpu_custom_call.1} parent=5 // pred_check
        %p1954 = pneg %p1953
      $region38: #{tpu_custom_call.1} parent=5 // pred_check_branch
        %1956 = sbr.rel (%p1954) target = $region40
      $region39: #{tpu_custom_call.1} parent=5 // pred_region
        %s1957 = ssub.s32 %s12, 2
        // Predicated region
        $region41: #{tpu_custom_call.1} parent=39 // pred_check
          %p1958 = pneg %p109
        $region42: #{tpu_custom_call.1} parent=39 // pred_check_branch
          %1960 = sbr.rel (%p1958) target = $region44
        $region43: #{tpu_custom_call.1} parent=39 // pred_region
          %s1961 = sand.u32 %s94, 1
          %s1962 = scalar_lea.sflag [#allocation3], %s1961
          %s1963 = sand.u32 %s94, 1
          %s1964 = smul.addr %s1963, 2
          %s1965 = scalar_lea.vmem [#allocation2], %s1964
          %1966 = dma.done %s1962, 32
        $region44: #{tpu_custom_call.1} parent=39 // pred_fallthru
          _
      $region40: #{tpu_custom_call.1} parent=5 // pred_fallthru
        _
    $region6: #{tpu_custom_call.1} parent=1 // loop_footer
      %s16 = sadd.s32 1, %s12
    $region7: #{tpu_custom_call.1} parent=1 // loop_footer_branch
      %11 = sbr.rel target = $region3
    $region8: #{tpu_custom_call.1} parent=1 // loop_exit
      _
    %1967 = vsyncpa [#allocation3], 1
    %s1968 = scalar_lea.sflag [#allocation3], 1
    %1969 = vsyncpa %s1968, 1

</llo_original>
